<compile_context>
chip_gen: v6e
topology: v6e:2x2x1
jax: 0.10.0
libtpu: 0.0.40
codegen_flags: <defaults>
</compile_context>

<pallas_src>
import math
from functools import partial

import numpy as np
import jax
import jax.numpy as jnp
from jax import lax
from jax.experimental import pallas as pl
from jax.experimental.pallas import tpu as pltpu


# ---------------------------------------------------------------------------
# The single fused kernel: one grid step = B_TILE samples.
#
# Row layout of every activation matrix is (spatial_row, sample) so that
#   "rows h0..h1 of every sample"    = one contiguous (8-aligned) row slice,
#   "max over adjacent spatial rows" = max of two contiguous row slabs.
# Lane layout of conv outputs is  half*128 + channel*W_pooled + pooled_col,
# so the 2-wide W max-pool is a max of the two 128-lane halves.
# ---------------------------------------------------------------------------

def _mnist_net_kernel(lhs_e_ref, lhs_o_ref, t1_ref, b1_ref, t2_ref, b2_ref,
                      w1_ref, b3_ref, w2_ref, b4_ref, o_ref):
    f32 = jnp.float32
    bf16 = jnp.bfloat16
    bt = o_ref.shape[0]                                   # samples per step

    # ---- conv1 (1->10, k=5): one K=140 matmul per output-row parity --------
    t1 = t1_ref[...]                                               # [140, 256]
    y_e = jnp.dot(lhs_e_ref[...], t1, preferred_element_type=f32)  # [12*bt,256]
    y_o = jnp.dot(lhs_o_ref[...], t1, preferred_element_type=f32)

    # 2x2 max-pool (H: parity max, W: lane-half max) + bias + relu.
    h1 = jnp.maximum(y_e, y_o)
    p1 = jnp.maximum(h1[:, :128], h1[:, 128:])                     # [12*bt,128]
    p1 = jnp.maximum(p1 + b1_ref[...], 0.0).astype(bf16)

    # ---- conv2 (10->20, k=5): 5 accumulated K=128 matmuls ------------------
    # (Dropout2d is an eval-mode identity.)
    y2 = jnp.dot(p1[0:8 * bt, :], t2_ref[0], preferred_element_type=f32)
    for kh in range(1, 5):
        y2 = y2 + jnp.dot(p1[kh * bt:(kh + 8) * bt, :], t2_ref[kh],
                          preferred_element_type=f32)              # [8*bt,256]
    h2 = jnp.maximum(y2[:, :128], y2[:, 128:])                     # W pool

    # ---- conv2 H-pool + bias + relu fused with fc1 (320->50) ---------------
    b2 = b2_ref[...]
    acc = None
    for r in range(4):
        top = h2[(2 * r) * bt:(2 * r + 1) * bt, :]
        bot = h2[(2 * r + 1) * bt:(2 * r + 2) * bt, :]
        t = jnp.maximum(jnp.maximum(top, bot) + b2, 0.0).astype(bf16)
        term = jnp.dot(t, w1_ref[r], preferred_element_type=f32)   # [bt, 50]
        acc = term if acc is None else acc + term
    h = jnp.maximum(acc + b3_ref[...], 0.0)                        # fc1 relu
    # F.dropout: eval-mode identity.

    # ---- fc2 (50->10) + relu + log_softmax (as in the torch module) --------
    z = jnp.dot(h.astype(bf16), w2_ref[...],
                preferred_element_type=f32) + b4_ref[...]
    z = jnp.maximum(z, 0.0)
    m = jnp.max(z, axis=-1, keepdims=True)
    e = z - m
    lse = jnp.log(jnp.sum(jnp.exp(e), axis=-1, keepdims=True))
    o_ref[...] = (e - lse).astype(o_ref.dtype)


# ---------------------------------------------------------------------------
# Wrapper: one pallas_call, grid over batch tiles.
# ---------------------------------------------------------------------------

def _build_conv1_lhs(x_bhw, bt):
    """x_bhw: [Bpad, 28, 28] bf16 -> (lhs_even, lhs_odd), each [12*Bpad, 140].

    Rows are ordered (grid_step, pooled_row r=0..11, sample_in_step b); lanes
    are kh*28 + w and hold x[b, 2r + parity + kh, w] (the 5 kh row-windows of
    the conv packed into one K=140 contraction)."""
    bpad = x_bhw.shape[0]
    ns = bpad // bt
    xt = x_bhw.reshape(ns, bt, 28, 28).transpose(0, 2, 1, 3)   # [ns,28,bt,28]

    def build(parity):
        pieces = [xt[:, parity + kh: parity + kh + 23: 2, :, :]
                  for kh in range(5)]                          # [ns,12,bt,28]
        return jnp.concatenate(pieces, axis=-1).reshape(ns * 12 * bt, 140)

    return build(0), build(1)


@partial(jax.jit, static_argnames=("bt",))
def _net_forward_impl(prep, x_nchw, bt):
    B = x_nchw.shape[0]
    bpad = ((B + bt - 1) // bt) * bt
    x = x_nchw.reshape(B, 28, 28).astype(jnp.bfloat16)         # bf16 in wrapper
    if bpad != B:
        x = jnp.pad(x, ((0, bpad - B), (0, 0), (0, 0)))
    lhs_e, lhs_o = _build_conv1_lhs(x, bt)

    out = pl.pallas_call(
        _mnist_net_kernel,
        out_shape=jax.ShapeDtypeStruct((bpad, 10), jnp.float32),
        grid=(bpad // bt,),
        in_specs=[
            pl.BlockSpec((12 * bt, 140), lambda s: (s, 0)),     # conv1 lhs even
            pl.BlockSpec((12 * bt, 140), lambda s: (s, 0)),     # conv1 lhs odd
            pl.BlockSpec((140, 256), lambda s: (0, 0)),         # conv1 Toeplitz
            pl.BlockSpec((1, 128), lambda s: (0, 0)),           # conv1 bias
            pl.BlockSpec((5, 128, 256), lambda s: (0, 0, 0)),   # conv2 Toeplitz
            pl.BlockSpec((1, 128), lambda s: (0, 0)),           # conv2 bias
            pl.BlockSpec((4, 128, 50), lambda s: (0, 0, 0)),    # fc1 (permuted)
            pl.BlockSpec((1, 50), lambda s: (0, 0)),            # fc1 bias
            pl.BlockSpec((50, 10), lambda s: (0, 0)),           # fc2
            pl.BlockSpec((1, 10), lambda s: (0, 0)),            # fc2 bias
        ],
        out_specs=pl.BlockSpec((bt, 10), lambda s: (s, 0)),
        compiler_params=pltpu.CompilerParams(
            dimension_semantics=("parallel",)),
    )(lhs_e, lhs_o, prep["t1"], prep["b1"], prep["t2"], prep["b2"],
      prep["w1"], prep["b3"], prep["w2"], prep["b4"])

    return out[:B]


def net_forward(prep, x_nchw, b_tile=64):
    """Batched forward pass; b_tile = samples per grid step (sweep 32-256)."""
    B = x_nchw.shape[0]
    bt = min(b_tile, max(8, ((B + 7) // 8) * 8))
    return _net_forward_impl(prep, x_nchw, bt=bt)


# ---------------------------------------------------------------------------
# Parameters: init (mirrors the torch module's init distributions) + one-time
# host-side layout prep (pooled-column Toeplitz conv weights, fc1 permutation,
# lane-repeated biases, bf16 casts).
# ---------------------------------------------------------------------------

def init_params(key):
    ks = jax.random.split(key, 8)
    p = {}
    # conv weights stored [kh, kw, cin, cout]; n = kh*kw*out_channels
    std1 = math.sqrt(2.0 / (5 * 5 * 10))
    p["conv1_w"] = std1 * jax.random.normal(ks[0], (5, 5, 1, 10), jnp.float32)
    p["conv1_b"] = jax.random.uniform(ks[1], (1, 10), jnp.float32,
                                      -1.0 / math.sqrt(25), 1.0 / math.sqrt(25))
    std2 = math.sqrt(2.0 / (5 * 5 * 20))
    p["conv2_w"] = std2 * jax.random.normal(ks[2], (5, 5, 10, 20), jnp.float32)
    p["conv2_b"] = jax.random.uniform(ks[3], (1, 20), jnp.float32,
                                      -1.0 / math.sqrt(250), 1.0 / math.sqrt(250))
    # linear weights stored [in, out]
    p["fc1_w"] = math.sqrt(2.0 / (320 + 50)) * jax.random.normal(
        ks[4], (320, 50), jnp.float32)
    p["fc1_b"] = jax.random.uniform(ks[5], (1, 50), jnp.float32,
                                    -1.0 / math.sqrt(320), 1.0 / math.sqrt(320))
    p["fc2_w"] = math.sqrt(2.0 / (50 + 10)) * jax.random.normal(
        ks[6], (50, 10), jnp.float32)
    p["fc2_b"] = jax.random.uniform(ks[7], (1, 10), jnp.float32,
                                    -1.0 / math.sqrt(50), 1.0 / math.sqrt(50))
    return p


def _conv_toeplitz_pooled(w, w_in, lanes_in):
    """w: [k,k,cin,cout] -> T: [k, lanes_in, 256] banded-matmul weights.

    Input lanes:  ci*w_in + iw   (lanes >= cin*w_in are zero rows).
    Output cols:  half*128 + co*(w_out//2) + owp, encoding conv output column
    ow = 2*owp + half, so the 2-wide W max-pool is max of the two 128-lane
    halves of the matmul result."""
    k = w.shape[0]
    cin, cout = w.shape[2], w.shape[3]
    w_out = w_in - k + 1
    w_half = w_out // 2
    wn = np.asarray(w, np.float32)
    t = np.zeros((k, lanes_in, 256), np.float32)
    for kh in range(k):
        for kw in range(k):
            for half in range(2):
                for owp in range(w_half):
                    iw = 2 * owp + half + kw
                    rows = np.arange(cin) * w_in + iw
                    cols = half * 128 + np.arange(cout) * w_half + owp
                    t[kh, rows[:, None], cols[None, :]] = wn[kh, kw]
    return t


def prepare_params(p):
    """One-time host-side weight rearrangement for the fused kernel."""
    prep = {}
    t1 = _conv_toeplitz_pooled(p["conv1_w"], w_in=28, lanes_in=28)  # [5,28,256]
    prep["t1"] = jnp.asarray(t1.reshape(140, 256), jnp.bfloat16)    # packed K
    t2 = _conv_toeplitz_pooled(p["conv2_w"], w_in=12, lanes_in=128)
    prep["t2"] = jnp.asarray(t2, jnp.bfloat16)                      # [5,128,256]

    b1 = np.zeros((1, 128), np.float32)
    b1[0, :120] = np.repeat(np.asarray(p["conv1_b"], np.float32).reshape(10), 12)
    prep["b1"] = jnp.asarray(b1)
    b2 = np.zeros((1, 128), np.float32)
    b2[0, :80] = np.repeat(np.asarray(p["conv2_b"], np.float32).reshape(20), 4)
    prep["b2"] = jnp.asarray(b2)

    # fc1: torch flatten index f = c*16 + i*4 + j ; kernel uses [i, c*4+j]
    w1 = np.asarray(p["fc1_w"], np.float32).reshape(20, 4, 4, 50)   # [c,i,j,n]
    w1p = np.zeros((4, 128, 50), np.float32)
    w1p[:, :80, :] = np.transpose(w1, (1, 0, 2, 3)).reshape(4, 80, 50)
    prep["w1"] = jnp.asarray(w1p, jnp.bfloat16)                     # [4,128,50]
    prep["b3"] = jnp.asarray(p["fc1_b"], jnp.float32)               # [1,50]
    prep["w2"] = jnp.asarray(p["fc2_w"], jnp.bfloat16)              # [50,10]
    prep["b4"] = jnp.asarray(p["fc2_b"], jnp.float32)               # [1,10]
    return prep


# ---------------------------------------------------------------------------
# Pure-JAX reference (same stored params) for a semantic self-check
# ---------------------------------------------------------------------------

def net_reference(params, x_nchw):
    def conv2d(x, w, b):            # w: [kh,kw,ci,co], cross-correlation, VALID
        w_oihw = jnp.transpose(w, (3, 2, 0, 1))
        y = lax.conv_general_dilated(x, w_oihw, (1, 1), "VALID",
                                     dimension_numbers=("NCHW", "OIHW", "NCHW"))
        return y + b.reshape(1, -1, 1, 1)

    def maxpool2(x):
        return jnp.maximum(jnp.maximum(x[:, :, 0::2, 0::2], x[:, :, 0::2, 1::2]),
                           jnp.maximum(x[:, :, 1::2, 0::2], x[:, :, 1::2, 1::2]))

    x = jax.nn.relu(maxpool2(conv2d(x_nchw, params["conv1_w"], params["conv1_b"])))
    x = jax.nn.relu(maxpool2(conv2d(x, params["conv2_w"], params["conv2_b"])))
    x = x.reshape(x.shape[0], 320)
    x = jax.nn.relu(x @ params["fc1_w"] + params["fc1_b"])
    x = jax.nn.relu(x @ params["fc2_w"] + params["fc2_b"])
    return jax.nn.log_softmax(x, axis=-1)


# ---------------------------------------------------------------------------
# Main
# ---------------------------------------------------------------------------

if __name__ == "__main__":
    key = jax.random.PRNGKey(0)
    k_param, k_x, k_x2 = jax.random.split(key, 3)
    params = init_params(k_param)
    prep = prepare_params(params)

    # MNIST-shaped input (28x28 required by the fc1 320-feature flatten)
    x = jax.random.normal(k_x, (2, 1, 28, 28), jnp.float32)
    out = jax.block_until_ready(net_forward(prep, x))

    assert out.shape == (2, 10), out.shape
    assert bool(jnp.all(jnp.isfinite(out)))
    # log_softmax rows should exponentiate-sum to 1
    assert bool(jnp.allclose(jnp.sum(jnp.exp(out), axis=1), 1.0, atol=1e-4))
    # semantic check against a pure-JAX f32 reference (bf16 MXU => loose tol)
    ref = net_reference(params, x)
    assert bool(jnp.allclose(out, ref, atol=5e-2)), float(jnp.max(jnp.abs(out - ref)))

    # larger batch: exercises the multi-step batched grid (B_TILE=64, 4 steps)
    xb = jax.random.normal(k_x2, (256, 1, 28, 28), jnp.float32)
    outb = jax.block_until_ready(net_forward(prep, xb))
    assert outb.shape == (256, 10), outb.shape
    assert bool(jnp.all(jnp.isfinite(outb)))
    assert bool(jnp.allclose(jnp.sum(jnp.exp(outb), axis=1), 1.0, atol=1e-4))
    refb = net_reference(params, xb)
    assert bool(jnp.allclose(outb, refb, atol=1e-1)), \
        float(jnp.max(jnp.abs(outb - refb)))

    print("KERNEL_OK")
</pallas_src>

<mosaic_0001>
module attributes {stable_mosaic.version = 11 : i64} {
  func.func @_mnist_net_kernel(%arg0: i32, %arg1: memref<96x140xbf16, #tpu.memory_space<vmem>>, %arg2: memref<96x140xbf16, #tpu.memory_space<vmem>>, %arg3: memref<140x256xbf16, #tpu.memory_space<vmem>>, %arg4: memref<1x128xf32, #tpu.memory_space<vmem>>, %arg5: memref<5x128x256xbf16, #tpu.memory_space<vmem>>, %arg6: memref<1x128xf32, #tpu.memory_space<vmem>>, %arg7: memref<4x128x50xbf16, #tpu.memory_space<vmem>>, %arg8: memref<1x50xf32, #tpu.memory_space<vmem>>, %arg9: memref<50x10xbf16, #tpu.memory_space<vmem>>, %arg10: memref<1x10xf32, #tpu.memory_space<vmem>>, %arg11: memref<8x10xf32, #tpu.memory_space<vmem>>) attributes {dimension_semantics = [#tpu.dimension_semantics<parallel>], iteration_bounds = array<i64: 1>, scalar_prefetch = 0 : i64, scratch_operands = 0 : i64, tpu.core_type = #tpu.core_type<tc>, window_params = [{transform_indices = @transform_0, window_bounds = array<i64: 96, 140>}, {transform_indices = @transform_1, window_bounds = array<i64: 96, 140>}, {pipeline_mode = #tpu.pipeline_mode<synchronous>, transform_indices = @transform_2, window_bounds = array<i64: 140, 256>}, {pipeline_mode = #tpu.pipeline_mode<synchronous>, transform_indices = @transform_3, window_bounds = array<i64: 1, 128>}, {pipeline_mode = #tpu.pipeline_mode<synchronous>, transform_indices = @transform_4, window_bounds = array<i64: 5, 128, 256>}, {pipeline_mode = #tpu.pipeline_mode<synchronous>, transform_indices = @transform_5, window_bounds = array<i64: 1, 128>}, {pipeline_mode = #tpu.pipeline_mode<synchronous>, transform_indices = @transform_6, window_bounds = array<i64: 4, 128, 50>}, {pipeline_mode = #tpu.pipeline_mode<synchronous>, transform_indices = @transform_7, window_bounds = array<i64: 1, 50>}, {pipeline_mode = #tpu.pipeline_mode<synchronous>, transform_indices = @transform_8, window_bounds = array<i64: 50, 10>}, {pipeline_mode = #tpu.pipeline_mode<synchronous>, transform_indices = @transform_9, window_bounds = array<i64: 1, 10>}, {transform_indices = @transform_10, window_bounds = array<i64: 8, 10>}]} {
    %c0 = arith.constant 0 : index
    %c0_0 = arith.constant 0 : index
    %0 = vector.load %arg3[%c0, %c0_0] : memref<140x256xbf16, #tpu.memory_space<vmem>>, vector<140x256xbf16>
    %c0_1 = arith.constant 0 : index
    %c0_2 = arith.constant 0 : index
    %1 = vector.load %arg1[%c0_1, %c0_2] : memref<96x140xbf16, #tpu.memory_space<vmem>>, vector<96x140xbf16>
    %cst = arith.constant dense<0.000000e+00> : vector<96x256xf32>
    %2 = tpu.matmul %1, %0, %cst {dimension_numbers = #tpu.dot_dimension_numbers<[1], [0], [0], [1], [0, 0, 1, 1], [], []>} : vector<96x140xbf16>, vector<140x256xbf16>, vector<96x256xf32> -> vector<96x256xf32>
    %c0_3 = arith.constant 0 : index
    %c0_4 = arith.constant 0 : index
    %3 = vector.load %arg2[%c0_3, %c0_4] : memref<96x140xbf16, #tpu.memory_space<vmem>>, vector<96x140xbf16>
    %cst_5 = arith.constant dense<0.000000e+00> : vector<96x256xf32>
    %4 = tpu.matmul %3, %0, %cst_5 {dimension_numbers = #tpu.dot_dimension_numbers<[1], [0], [0], [1], [0, 0, 1, 1], [], []>} : vector<96x140xbf16>, vector<140x256xbf16>, vector<96x256xf32> -> vector<96x256xf32>
    %5 = arith.maximumf %2, %4 : vector<96x256xf32>
    %6 = vector.extract_strided_slice %5 {offsets = [0, 0], sizes = [96, 128], strides = [1, 1]} : vector<96x256xf32> to vector<96x128xf32>
    %7 = vector.extract_strided_slice %5 {offsets = [0, 128], sizes = [96, 128], strides = [1, 1]} : vector<96x256xf32> to vector<96x128xf32>
    %8 = arith.maximumf %6, %7 : vector<96x128xf32>
    %c0_6 = arith.constant 0 : index
    %c0_7 = arith.constant 0 : index
    %9 = vector.load %arg4[%c0_6, %c0_7] : memref<1x128xf32, #tpu.memory_space<vmem>>, vector<1x128xf32>
    %10 = vector.broadcast %9 : vector<1x128xf32> to vector<96x128xf32>
    %11 = arith.addf %8, %10 : vector<96x128xf32>
    %cst_8 = arith.constant 0.000000e+00 : f32
    %12 = vector.broadcast %cst_8 : f32 to vector<96x128xf32>
    %13 = arith.maximumf %11, %12 : vector<96x128xf32>
    %14 = arith.truncf %13 : vector<96x128xf32> to vector<96x128xbf16>
    %15 = vector.extract_strided_slice %14 {offsets = [0, 0], sizes = [64, 128], strides = [1, 1]} : vector<96x128xbf16> to vector<64x128xbf16>
    %c0_9 = arith.constant 0 : index
    %c0_10 = arith.constant 0 : index
    %c0_11 = arith.constant 0 : index
    %16 = vector.load %arg5[%c0_9, %c0_10, %c0_11] : memref<5x128x256xbf16, #tpu.memory_space<vmem>>, vector<1x128x256xbf16>
    %17 = vector.shape_cast %16 : vector<1x128x256xbf16> to vector<128x256xbf16>
    %cst_12 = arith.constant dense<0.000000e+00> : vector<64x256xf32>
    %18 = tpu.matmul %15, %17, %cst_12 {dimension_numbers = #tpu.dot_dimension_numbers<[1], [0], [0], [1], [0, 0, 1, 1], [], []>} : vector<64x128xbf16>, vector<128x256xbf16>, vector<64x256xf32> -> vector<64x256xf32>
    %19 = vector.extract_strided_slice %14 {offsets = [8, 0], sizes = [64, 128], strides = [1, 1]} : vector<96x128xbf16> to vector<64x128xbf16>
    %c1 = arith.constant 1 : index
    %c0_13 = arith.constant 0 : index
    %c0_14 = arith.constant 0 : index
    %20 = vector.load %arg5[%c1, %c0_13, %c0_14] : memref<5x128x256xbf16, #tpu.memory_space<vmem>>, vector<1x128x256xbf16>
    %21 = vector.shape_cast %20 : vector<1x128x256xbf16> to vector<128x256xbf16>
    %cst_15 = arith.constant dense<0.000000e+00> : vector<64x256xf32>
    %22 = tpu.matmul %19, %21, %cst_15 {dimension_numbers = #tpu.dot_dimension_numbers<[1], [0], [0], [1], [0, 0, 1, 1], [], []>} : vector<64x128xbf16>, vector<128x256xbf16>, vector<64x256xf32> -> vector<64x256xf32>
    %23 = arith.addf %18, %22 : vector<64x256xf32>
    %24 = vector.extract_strided_slice %14 {offsets = [16, 0], sizes = [64, 128], strides = [1, 1]} : vector<96x128xbf16> to vector<64x128xbf16>
    %c2 = arith.constant 2 : index
    %c0_16 = arith.constant 0 : index
    %c0_17 = arith.constant 0 : index
    %25 = vector.load %arg5[%c2, %c0_16, %c0_17] : memref<5x128x256xbf16, #tpu.memory_space<vmem>>, vector<1x128x256xbf16>
    %26 = vector.shape_cast %25 : vector<1x128x256xbf16> to vector<128x256xbf16>
    %cst_18 = arith.constant dense<0.000000e+00> : vector<64x256xf32>
    %27 = tpu.matmul %24, %26, %cst_18 {dimension_numbers = #tpu.dot_dimension_numbers<[1], [0], [0], [1], [0, 0, 1, 1], [], []>} : vector<64x128xbf16>, vector<128x256xbf16>, vector<64x256xf32> -> vector<64x256xf32>
    %28 = arith.addf %23, %27 : vector<64x256xf32>
    %29 = vector.extract_strided_slice %14 {offsets = [24, 0], sizes = [64, 128], strides = [1, 1]} : vector<96x128xbf16> to vector<64x128xbf16>
    %c3 = arith.constant 3 : index
    %c0_19 = arith.constant 0 : index
    %c0_20 = arith.constant 0 : index
    %30 = vector.load %arg5[%c3, %c0_19, %c0_20] : memref<5x128x256xbf16, #tpu.memory_space<vmem>>, vector<1x128x256xbf16>
    %31 = vector.shape_cast %30 : vector<1x128x256xbf16> to vector<128x256xbf16>
    %cst_21 = arith.constant dense<0.000000e+00> : vector<64x256xf32>
    %32 = tpu.matmul %29, %31, %cst_21 {dimension_numbers = #tpu.dot_dimension_numbers<[1], [0], [0], [1], [0, 0, 1, 1], [], []>} : vector<64x128xbf16>, vector<128x256xbf16>, vector<64x256xf32> -> vector<64x256xf32>
    %33 = arith.addf %28, %32 : vector<64x256xf32>
    %34 = vector.extract_strided_slice %14 {offsets = [32, 0], sizes = [64, 128], strides = [1, 1]} : vector<96x128xbf16> to vector<64x128xbf16>
    %c4 = arith.constant 4 : index
    %c0_22 = arith.constant 0 : index
    %c0_23 = arith.constant 0 : index
    %35 = vector.load %arg5[%c4, %c0_22, %c0_23] : memref<5x128x256xbf16, #tpu.memory_space<vmem>>, vector<1x128x256xbf16>
    %36 = vector.shape_cast %35 : vector<1x128x256xbf16> to vector<128x256xbf16>
    %cst_24 = arith.constant dense<0.000000e+00> : vector<64x256xf32>
    %37 = tpu.matmul %34, %36, %cst_24 {dimension_numbers = #tpu.dot_dimension_numbers<[1], [0], [0], [1], [0, 0, 1, 1], [], []>} : vector<64x128xbf16>, vector<128x256xbf16>, vector<64x256xf32> -> vector<64x256xf32>
    %38 = arith.addf %33, %37 : vector<64x256xf32>
    %39 = vector.extract_strided_slice %38 {offsets = [0, 0], sizes = [64, 128], strides = [1, 1]} : vector<64x256xf32> to vector<64x128xf32>
    %40 = vector.extract_strided_slice %38 {offsets = [0, 128], sizes = [64, 128], strides = [1, 1]} : vector<64x256xf32> to vector<64x128xf32>
    %41 = arith.maximumf %39, %40 : vector<64x128xf32>
    %c0_25 = arith.constant 0 : index
    %c0_26 = arith.constant 0 : index
    %42 = vector.load %arg6[%c0_25, %c0_26] : memref<1x128xf32, #tpu.memory_space<vmem>>, vector<1x128xf32>
    %43 = vector.extract_strided_slice %41 {offsets = [0, 0], sizes = [8, 128], strides = [1, 1]} : vector<64x128xf32> to vector<8x128xf32>
    %44 = vector.extract_strided_slice %41 {offsets = [8, 0], sizes = [8, 128], strides = [1, 1]} : vector<64x128xf32> to vector<8x128xf32>
    %45 = arith.maximumf %43, %44 : vector<8x128xf32>
    %46 = vector.broadcast %42 : vector<1x128xf32> to vector<8x128xf32>
    %47 = arith.addf %45, %46 : vector<8x128xf32>
    %cst_27 = arith.constant 0.000000e+00 : f32
    %48 = vector.broadcast %cst_27 : f32 to vector<8x128xf32>
    %49 = arith.maximumf %47, %48 : vector<8x128xf32>
    %50 = arith.truncf %49 : vector<8x128xf32> to vector<8x128xbf16>
    %c0_28 = arith.constant 0 : index
    %c0_29 = arith.constant 0 : index
    %c0_30 = arith.constant 0 : index
    %51 = vector.load %arg7[%c0_28, %c0_29, %c0_30] : memref<4x128x50xbf16, #tpu.memory_space<vmem>>, vector<1x128x50xbf16>
    %52 = vector.shape_cast %51 : vector<1x128x50xbf16> to vector<128x50xbf16>
    %cst_31 = arith.constant dense<0.000000e+00> : vector<8x50xf32>
    %53 = tpu.matmul %50, %52, %cst_31 {dimension_numbers = #tpu.dot_dimension_numbers<[1], [0], [0], [1], [0, 0, 1, 1], [], []>} : vector<8x128xbf16>, vector<128x50xbf16>, vector<8x50xf32> -> vector<8x50xf32>
    %54 = vector.extract_strided_slice %41 {offsets = [16, 0], sizes = [8, 128], strides = [1, 1]} : vector<64x128xf32> to vector<8x128xf32>
    %55 = vector.extract_strided_slice %41 {offsets = [24, 0], sizes = [8, 128], strides = [1, 1]} : vector<64x128xf32> to vector<8x128xf32>
    %56 = arith.maximumf %54, %55 : vector<8x128xf32>
    %57 = vector.broadcast %42 : vector<1x128xf32> to vector<8x128xf32>
    %58 = arith.addf %56, %57 : vector<8x128xf32>
    %cst_32 = arith.constant 0.000000e+00 : f32
    %59 = vector.broadcast %cst_32 : f32 to vector<8x128xf32>
    %60 = arith.maximumf %58, %59 : vector<8x128xf32>
    %61 = arith.truncf %60 : vector<8x128xf32> to vector<8x128xbf16>
    %c1_33 = arith.constant 1 : index
    %c0_34 = arith.constant 0 : index
    %c0_35 = arith.constant 0 : index
    %62 = vector.load %arg7[%c1_33, %c0_34, %c0_35] : memref<4x128x50xbf16, #tpu.memory_space<vmem>>, vector<1x128x50xbf16>
    %63 = vector.shape_cast %62 : vector<1x128x50xbf16> to vector<128x50xbf16>
    %cst_36 = arith.constant dense<0.000000e+00> : vector<8x50xf32>
    %64 = tpu.matmul %61, %63, %cst_36 {dimension_numbers = #tpu.dot_dimension_numbers<[1], [0], [0], [1], [0, 0, 1, 1], [], []>} : vector<8x128xbf16>, vector<128x50xbf16>, vector<8x50xf32> -> vector<8x50xf32>
    %65 = arith.addf %53, %64 : vector<8x50xf32>
    %66 = vector.extract_strided_slice %41 {offsets = [32, 0], sizes = [8, 128], strides = [1, 1]} : vector<64x128xf32> to vector<8x128xf32>
    %67 = vector.extract_strided_slice %41 {offsets = [40, 0], sizes = [8, 128], strides = [1, 1]} : vector<64x128xf32> to vector<8x128xf32>
    %68 = arith.maximumf %66, %67 : vector<8x128xf32>
    %69 = vector.broadcast %42 : vector<1x128xf32> to vector<8x128xf32>
    %70 = arith.addf %68, %69 : vector<8x128xf32>
    %cst_37 = arith.constant 0.000000e+00 : f32
    %71 = vector.broadcast %cst_37 : f32 to vector<8x128xf32>
    %72 = arith.maximumf %70, %71 : vector<8x128xf32>
    %73 = arith.truncf %72 : vector<8x128xf32> to vector<8x128xbf16>
    %c2_38 = arith.constant 2 : index
    %c0_39 = arith.constant 0 : index
    %c0_40 = arith.constant 0 : index
    %74 = vector.load %arg7[%c2_38, %c0_39, %c0_40] : memref<4x128x50xbf16, #tpu.memory_space<vmem>>, vector<1x128x50xbf16>
    %75 = vector.shape_cast %74 : vector<1x128x50xbf16> to vector<128x50xbf16>
    %cst_41 = arith.constant dense<0.000000e+00> : vector<8x50xf32>
    %76 = tpu.matmul %73, %75, %cst_41 {dimension_numbers = #tpu.dot_dimension_numbers<[1], [0], [0], [1], [0, 0, 1, 1], [], []>} : vector<8x128xbf16>, vector<128x50xbf16>, vector<8x50xf32> -> vector<8x50xf32>
    %77 = arith.addf %65, %76 : vector<8x50xf32>
    %78 = vector.extract_strided_slice %41 {offsets = [48, 0], sizes = [8, 128], strides = [1, 1]} : vector<64x128xf32> to vector<8x128xf32>
    %79 = vector.extract_strided_slice %41 {offsets = [56, 0], sizes = [8, 128], strides = [1, 1]} : vector<64x128xf32> to vector<8x128xf32>
    %80 = arith.maximumf %78, %79 : vector<8x128xf32>
    %81 = vector.broadcast %42 : vector<1x128xf32> to vector<8x128xf32>
    %82 = arith.addf %80, %81 : vector<8x128xf32>
    %cst_42 = arith.constant 0.000000e+00 : f32
    %83 = vector.broadcast %cst_42 : f32 to vector<8x128xf32>
    %84 = arith.maximumf %82, %83 : vector<8x128xf32>
    %85 = arith.truncf %84 : vector<8x128xf32> to vector<8x128xbf16>
    %c3_43 = arith.constant 3 : index
    %c0_44 = arith.constant 0 : index
    %c0_45 = arith.constant 0 : index
    %86 = vector.load %arg7[%c3_43, %c0_44, %c0_45] : memref<4x128x50xbf16, #tpu.memory_space<vmem>>, vector<1x128x50xbf16>
    %87 = vector.shape_cast %86 : vector<1x128x50xbf16> to vector<128x50xbf16>
    %cst_46 = arith.constant dense<0.000000e+00> : vector<8x50xf32>
    %88 = tpu.matmul %85, %87, %cst_46 {dimension_numbers = #tpu.dot_dimension_numbers<[1], [0], [0], [1], [0, 0, 1, 1], [], []>} : vector<8x128xbf16>, vector<128x50xbf16>, vector<8x50xf32> -> vector<8x50xf32>
    %89 = arith.addf %77, %88 : vector<8x50xf32>
    %c0_47 = arith.constant 0 : index
    %c0_48 = arith.constant 0 : index
    %90 = vector.load %arg8[%c0_47, %c0_48] : memref<1x50xf32, #tpu.memory_space<vmem>>, vector<1x50xf32>
    %91 = vector.broadcast %90 : vector<1x50xf32> to vector<8x50xf32>
    %92 = arith.addf %89, %91 : vector<8x50xf32>
    %cst_49 = arith.constant 0.000000e+00 : f32
    %93 = vector.broadcast %cst_49 : f32 to vector<8x50xf32>
    %94 = arith.maximumf %92, %93 : vector<8x50xf32>
    %95 = arith.truncf %94 : vector<8x50xf32> to vector<8x50xbf16>
    %c0_50 = arith.constant 0 : index
    %c0_51 = arith.constant 0 : index
    %96 = vector.load %arg9[%c0_50, %c0_51] : memref<50x10xbf16, #tpu.memory_space<vmem>>, vector<50x10xbf16>
    %cst_52 = arith.constant dense<0.000000e+00> : vector<8x10xf32>
    %97 = tpu.matmul %95, %96, %cst_52 {dimension_numbers = #tpu.dot_dimension_numbers<[1], [0], [0], [1], [0, 0, 1, 1], [], []>} : vector<8x50xbf16>, vector<50x10xbf16>, vector<8x10xf32> -> vector<8x10xf32>
    %c0_53 = arith.constant 0 : index
    %c0_54 = arith.constant 0 : index
    %98 = vector.load %arg10[%c0_53, %c0_54] : memref<1x10xf32, #tpu.memory_space<vmem>>, vector<1x10xf32>
    %99 = vector.broadcast %98 : vector<1x10xf32> to vector<8x10xf32>
    %100 = arith.addf %97, %99 : vector<8x10xf32>
    %cst_55 = arith.constant 0.000000e+00 : f32
    %101 = vector.broadcast %cst_55 : f32 to vector<8x10xf32>
    %102 = arith.maximumf %100, %101 : vector<8x10xf32>
    %cst_56 = arith.constant dense<0xFF800000> : vector<8xf32>
    %103 = vector.multi_reduction <maximumf>, %102, %cst_56 [1] : vector<8x10xf32> to vector<8xf32>
    %104 = vector.shape_cast %103 : vector<8xf32> to vector<8x1xf32>
    %105 = vector.broadcast %104 : vector<8x1xf32> to vector<8x10xf32>
    %106 = arith.subf %102, %105 : vector<8x10xf32>
    %107 = math.exp %106 : vector<8x10xf32>
    %cst_57 = arith.constant dense<0.000000e+00> : vector<8xf32>
    %108 = vector.multi_reduction <add>, %107, %cst_57 [1] : vector<8x10xf32> to vector<8xf32>
    %109 = vector.shape_cast %108 : vector<8xf32> to vector<8x1xf32>
    %110 = math.log %109 : vector<8x1xf32>
    %111 = vector.broadcast %110 : vector<8x1xf32> to vector<8x10xf32>
    %112 = arith.subf %106, %111 : vector<8x10xf32>
    %c0_58 = arith.constant 0 : index
    %c0_59 = arith.constant 0 : index
    %113 = vector.load %arg11[%c0_58, %c0_59] : memref<8x10xf32, #tpu.memory_space<vmem>>, vector<8x10xf32>
    tpu.vector_store %arg11[%c0_58, %c0_59], %112 {strides = array<i32>} : memref<8x10xf32, #tpu.memory_space<vmem>>, vector<8x10xf32>,
    return
  }
  func.func @transform_0(%arg0: i32) -> (i32, i32) {
    %c0_i32 = arith.constant 0 : i32
    %c0_i32_0 = arith.constant 0 : i32
    return %arg0, %c0_i32 : i32, i32
  }
  func.func @transform_1(%arg0: i32) -> (i32, i32) {
    %c0_i32 = arith.constant 0 : i32
    %c0_i32_0 = arith.constant 0 : i32
    return %arg0, %c0_i32 : i32, i32
  }
  func.func @transform_2(%arg0: i32) -> (i32, i32) {
    %c0_i32 = arith.constant 0 : i32
    %c0_i32_0 = arith.constant 0 : i32
    %c0_i32_1 = arith.constant 0 : i32
    return %c0_i32, %c0_i32_0 : i32, i32
  }
  func.func @transform_3(%arg0: i32) -> (i32, i32) {
    %c0_i32 = arith.constant 0 : i32
    %c0_i32_0 = arith.constant 0 : i32
    %c0_i32_1 = arith.constant 0 : i32
    return %c0_i32, %c0_i32_0 : i32, i32
  }
  func.func @transform_4(%arg0: i32) -> (i32, i32, i32) {
    %c0_i32 = arith.constant 0 : i32
    %c0_i32_0 = arith.constant 0 : i32
    %c0_i32_1 = arith.constant 0 : i32
    %c0_i32_2 = arith.constant 0 : i32
    return %c0_i32, %c0_i32_0, %c0_i32_1 : i32, i32, i32
  }
  func.func @transform_5(%arg0: i32) -> (i32, i32) {
    %c0_i32 = arith.constant 0 : i32
    %c0_i32_0 = arith.constant 0 : i32
    %c0_i32_1 = arith.constant 0 : i32
    return %c0_i32, %c0_i32_0 : i32, i32
  }
  func.func @transform_6(%arg0: i32) -> (i32, i32, i32) {
    %c0_i32 = arith.constant 0 : i32
    %c0_i32_0 = arith.constant 0 : i32
    %c0_i32_1 = arith.constant 0 : i32
    %c0_i32_2 = arith.constant 0 : i32
    return %c0_i32, %c0_i32_0, %c0_i32_1 : i32, i32, i32
  }
  func.func @transform_7(%arg0: i32) -> (i32, i32) {
    %c0_i32 = arith.constant 0 : i32
    %c0_i32_0 = arith.constant 0 : i32
    %c0_i32_1 = arith.constant 0 : i32
    return %c0_i32, %c0_i32_0 : i32, i32
  }
  func.func @transform_8(%arg0: i32) -> (i32, i32) {
    %c0_i32 = arith.constant 0 : i32
    %c0_i32_0 = arith.constant 0 : i32
    %c0_i32_1 = arith.constant 0 : i32
    return %c0_i32, %c0_i32_0 : i32, i32
  }
  func.func @transform_9(%arg0: i32) -> (i32, i32) {
    %c0_i32 = arith.constant 0 : i32
    %c0_i32_0 = arith.constant 0 : i32
    %c0_i32_1 = arith.constant 0 : i32
    return %c0_i32, %c0_i32_0 : i32, i32
  }
  func.func @transform_10(%arg0: i32) -> (i32, i32) {
    %c0_i32 = arith.constant 0 : i32
    %c0_i32_0 = arith.constant 0 : i32
    return %arg0, %c0_i32 : i32, i32
  }
}

</mosaic_0001>

<llo_original>
// kernel: _net_forward_impl.1
$region0: #{_net_forward_impl.1}
  #allocation0 [shape = 'u32[]', space=smem, size = 0x4, offset = 0x4, fixed_abs, tag = 'smem constant byte address 0x4 - core index']
  #allocation1 [shape = 'u32[144,128]{1,0:T(1,128)}', space=vmem, size = 0x12000, scoped, tag = 'internal scratch']
  %s0 = inlined_call_operand.vmem [shape: bf16[96,140], index: 0, kind: input, shape index: {}]
  %s1 = inlined_call_operand.vmem [shape: bf16[96,140], index: 1, kind: input, shape index: {}]
  %s2 = inlined_call_operand.vmem [shape: bf16[140,256], index: 2, kind: input, shape index: {}]
  %s3 = inlined_call_operand.vmem [shape: f32[1,128], index: 3, kind: input, shape index: {}]
  %s4 = inlined_call_operand.vmem [shape: bf16[5,128,256], index: 4, kind: input, shape index: {}]
  %s5 = inlined_call_operand.vmem [shape: f32[1,128], index: 5, kind: input, shape index: {}]
  %s6 = inlined_call_operand.vmem [shape: bf16[4,128,50], index: 6, kind: input, shape index: {}]
  %s7 = inlined_call_operand.vmem [shape: f32[1,50], index: 7, kind: input, shape index: {}]
  %s8 = inlined_call_operand.vmem [shape: bf16[50,10], index: 8, kind: input, shape index: {}]
  %s9 = inlined_call_operand.vmem [shape: f32[1,10], index: 9, kind: input, shape index: {}]
  %s10 = inlined_call_operand.vmem [shape: f32[8,10], index: 10, kind: output, shape index: {}]
  %s11 = sld [smem:[#allocation0]]
  $region50: #{_net_forward_impl.1} parent=0
    _
  %s13 = ssub.s32 1, %s11
  %s14 = scalar_select 0, %s13, %s11
  // Predicated region
  $region2: #{_net_forward_impl.1} parent=0 // pred_check
    _
  $region3: #{_net_forward_impl.1} parent=0 // pred_check_branch
    %16 = sbr.rel (0) target = $region5
  $region4: #{_net_forward_impl.1} parent=0 // pred_region
    _
  $region5: #{_net_forward_impl.1} parent=0 // pred_fallthru
    _
  // Predicated region
  $region6: #{_net_forward_impl.1} parent=0 // pred_check
    _
  $region7: #{_net_forward_impl.1} parent=0 // pred_check_branch
    %18 = sbr.rel (0) target = $region9
  $region8: #{_net_forward_impl.1} parent=0 // pred_region
    _
  $region9: #{_net_forward_impl.1} parent=0 // pred_fallthru
    _
  // Predicated region
  $region10: #{_net_forward_impl.1} parent=0 // pred_check
    _
  $region11: #{_net_forward_impl.1} parent=0 // pred_check_branch
    %20 = sbr.rel (0) target = $region13
  $region12: #{_net_forward_impl.1} parent=0 // pred_region
    _
  $region13: #{_net_forward_impl.1} parent=0 // pred_fallthru
    _
  // Predicated region
  $region14: #{_net_forward_impl.1} parent=0 // pred_check
    _
  $region15: #{_net_forward_impl.1} parent=0 // pred_check_branch
    %22 = sbr.rel (0) target = $region17
  $region16: #{_net_forward_impl.1} parent=0 // pred_region
    _
  $region17: #{_net_forward_impl.1} parent=0 // pred_fallthru
    _
  // Predicated region
  $region18: #{_net_forward_impl.1} parent=0 // pred_check
    _
  $region19: #{_net_forward_impl.1} parent=0 // pred_check_branch
    %24 = sbr.rel (0) target = $region21
  $region20: #{_net_forward_impl.1} parent=0 // pred_region
    _
  $region21: #{_net_forward_impl.1} parent=0 // pred_fallthru
    _
  // Predicated region
  $region22: #{_net_forward_impl.1} parent=0 // pred_check
    _
  $region23: #{_net_forward_impl.1} parent=0 // pred_check_branch
    %26 = sbr.rel (0) target = $region25
  $region24: #{_net_forward_impl.1} parent=0 // pred_region
    _
  $region25: #{_net_forward_impl.1} parent=0 // pred_fallthru
    _
  // Predicated region
  $region26: #{_net_forward_impl.1} parent=0 // pred_check
    _
  $region27: #{_net_forward_impl.1} parent=0 // pred_check_branch
    %28 = sbr.rel (0) target = $region29
  $region28: #{_net_forward_impl.1} parent=0 // pred_region
    _
  $region29: #{_net_forward_impl.1} parent=0 // pred_fallthru
    _
  // Predicated region
  $region30: #{_net_forward_impl.1} parent=0 // pred_check
    _
  $region31: #{_net_forward_impl.1} parent=0 // pred_check_branch
    %30 = sbr.rel (0) target = $region33
  $region32: #{_net_forward_impl.1} parent=0 // pred_region
    _
  $region33: #{_net_forward_impl.1} parent=0 // pred_fallthru
    _
  // Predicated region
  $region34: #{_net_forward_impl.1} parent=0 // pred_check
    _
  $region35: #{_net_forward_impl.1} parent=0 // pred_check_branch
    %32 = sbr.rel (0) target = $region37
  $region36: #{_net_forward_impl.1} parent=0 // pred_region
    _
  $region37: #{_net_forward_impl.1} parent=0 // pred_fallthru
    _
  // Predicated region
  $region38: #{_net_forward_impl.1} parent=0 // pred_check
    _
  $region39: #{_net_forward_impl.1} parent=0 // pred_check_branch
    %34 = sbr.rel (0) target = $region41
  $region40: #{_net_forward_impl.1} parent=0 // pred_region
    _
  $region41: #{_net_forward_impl.1} parent=0 // pred_fallthru
    _
  %v36 = vld [vmem:[%s2] sm:$0xff]
  %v37 = vld [vmem:[%s2 + $0x8] sm:$0xff]
  %v38 = vld [vmem:[%s2 + $0x10] sm:$0xff]
  %v39 = vld [vmem:[%s2 + $0x18] sm:$0xff]
  %v40 = vld [vmem:[%s2 + $0x20] sm:$0xff]
  %v41 = vld [vmem:[%s2 + $0x28] sm:$0xff]
  %v42 = vld [vmem:[%s2 + $0x30] sm:$0xff]
  %v43 = vld [vmem:[%s2 + $0x38] sm:$0xff]
  %v44 = vld [vmem:[%s2 + $0x40] sm:$0xff]
  %v45 = vld [vmem:[%s2 + $0x48] sm:$0xff]
  %v46 = vld [vmem:[%s2 + $0x50] sm:$0xff]
  %v47 = vld [vmem:[%s2 + $0x58] sm:$0xff]
  %v48 = vld [vmem:[%s2 + $0x60] sm:$0xff]
  %v49 = vld [vmem:[%s2 + $0x68] sm:$0xff]
  %v50 = vld [vmem:[%s2 + $0x70] sm:$0xff]
  %v51 = vld [vmem:[%s2 + $0x78] sm:$0xff]
  %v52 = vld [vmem:[%s2 + $0x80] sm:$0xff]
  %v53 = vld [vmem:[%s2 + $0x88] sm:$0x33]
  %v54 = vld [vmem:[%s0] sm:$0xff]
  %v55 = vld [vmem:[%s0 + $0x8] sm:$0xff]
  %v56 = vld [vmem:[%s0 + $0x10] sm:$0xff]
  %v57 = vld [vmem:[%s0 + $0x18] sm:$0xff]
  %v58 = vld [vmem:[%s0 + $0x20] sm:$0xff]
  %v59 = vld [vmem:[%s0 + $0x28] sm:$0xff]
  %v60 = vld [vmem:[%s0 + $0x30] sm:$0xff]
  %v61 = vld [vmem:[%s0 + $0x38] sm:$0xff]
  %v62 = vld [vmem:[%s0 + $0x40] sm:$0xff]
  %v63 = vld [vmem:[%s0 + $0x48] sm:$0xff]
  %v64 = vld [vmem:[%s0 + $0x50] sm:$0xff]
  %v65 = vld [vmem:[%s0 + $0x58] sm:$0xff]
  %v78 = vunpack.c.l.b16 %v54
  %v79 = vunpack.c.h.b16 %v54
  %v80 = vunpack.c.l.b16 %v55
  %v81 = vunpack.c.h.b16 %v55
  %v82 = vunpack.c.l.b16 %v56
  %v83 = vunpack.c.h.b16 %v56
  %v84 = vunpack.c.l.b16 %v57
  %v85 = vunpack.c.h.b16 %v57
  %v86 = vunpack.c.l.b16 %v58
  %v87 = vunpack.c.h.b16 %v58
  %v88 = vunpack.c.l.b16 %v59
  %v89 = vunpack.c.h.b16 %v59
  %v90 = vunpack.c.l.b16 %v60
  %v91 = vunpack.c.h.b16 %v60
  %v92 = vunpack.c.l.b16 %v61
  %v93 = vunpack.c.h.b16 %v61
  %v94 = vunpack.c.l.b16 %v62
  %v95 = vunpack.c.h.b16 %v62
  %v96 = vunpack.c.l.b16 %v63
  %v97 = vunpack.c.h.b16 %v63
  %v98 = vunpack.c.l.b16 %v64
  %v99 = vunpack.c.h.b16 %v64
  %v100 = vunpack.c.l.b16 %v65
  %v101 = vunpack.c.h.b16 %v65
  %v102 = vpack.c.b16 %v80, %v78
  %v103 = vpack.c.b16 %v81, %v79
  %v104 = vpack.c.b16 %v84, %v82
  %v105 = vpack.c.b16 %v85, %v83
  %v106 = vpack.c.b16 %v88, %v86
  %v107 = vpack.c.b16 %v89, %v87
  %v108 = vpack.c.b16 %v92, %v90
  %v109 = vpack.c.b16 %v93, %v91
  %v110 = vpack.c.b16 %v96, %v94
  %v111 = vpack.c.b16 %v97, %v95
  %v112 = vpack.c.b16 %v100, %v98
  %v113 = vpack.c.b16 %v101, %v99
  %v138 = vunpack.c.l.b16 %v36
  %v139 = vunpack.c.h.b16 %v36
  %v140 = vunpack.c.l.b16 %v37
  %v141 = vunpack.c.h.b16 %v37
  %v142 = vunpack.c.l.b16 %v38
  %v143 = vunpack.c.h.b16 %v38
  %v144 = vunpack.c.l.b16 %v39
  %v145 = vunpack.c.h.b16 %v39
  %v146 = vunpack.c.l.b16 %v40
  %v147 = vunpack.c.h.b16 %v40
  %v148 = vunpack.c.l.b16 %v41
  %v149 = vunpack.c.h.b16 %v41
  %v150 = vunpack.c.l.b16 %v42
  %v151 = vunpack.c.h.b16 %v42
  %v152 = vunpack.c.l.b16 %v43
  %v153 = vunpack.c.h.b16 %v43
  %v154 = vunpack.c.l.b16 %v44
  %v155 = vunpack.c.h.b16 %v44
  %v156 = vunpack.c.l.b16 %v45
  %v157 = vunpack.c.h.b16 %v45
  %v158 = vunpack.c.l.b16 %v46
  %v159 = vunpack.c.h.b16 %v46
  %v160 = vunpack.c.l.b16 %v47
  %v161 = vunpack.c.h.b16 %v47
  %v162 = vunpack.c.l.b16 %v48
  %v163 = vunpack.c.h.b16 %v48
  %v164 = vunpack.c.l.b16 %v49
  %v165 = vunpack.c.h.b16 %v49
  %v166 = vunpack.c.l.b16 %v50
  %v167 = vunpack.c.h.b16 %v50
  %v168 = vunpack.c.l.b16 %v51
  %v169 = vunpack.c.h.b16 %v51
  %v170 = vunpack.c.l.b16 %v52
  %v171 = vunpack.c.h.b16 %v52
  %v172 = vunpack.c.l.b16 %v53
  %v173 = vunpack.c.h.b16 %v53
  %v174 = vpack.c.b16 %v140, %v138
  %v175 = vpack.c.b16 %v141, %v139
  %v176 = vpack.c.b16 %v144, %v142
  %v177 = vpack.c.b16 %v145, %v143
  %v178 = vpack.c.b16 %v148, %v146
  %v179 = vpack.c.b16 %v149, %v147
  %v180 = vpack.c.b16 %v152, %v150
  %v181 = vpack.c.b16 %v153, %v151
  %v182 = vpack.c.b16 %v156, %v154
  %v183 = vpack.c.b16 %v157, %v155
  %v184 = vpack.c.b16 %v160, %v158
  %v185 = vpack.c.b16 %v161, %v159
  %v186 = vpack.c.b16 %v164, %v162
  %v187 = vpack.c.b16 %v165, %v163
  %v188 = vpack.c.b16 %v168, %v166
  %v189 = vpack.c.b16 %v169, %v167
  %v190 = vpack.c.b16 %v172, %v170
  %v191 = vpack.c.b16 %v173, %v171
  %vm208 = vcmask 97280
  %v210 = vsel %vm208, %v103, 0
  %v213 = vsel %vm208, %v105, 0
  %v216 = vsel %vm208, %v107, 0
  %v219 = vsel %vm208, %v109, 0
  %v222 = vsel %vm208, %v111, 0
  %v225 = vsel %vm208, %v113, 0
  %vm227 = vcmask 1045504
  %v229 = vsel %vm227, %v190, 0
  %v232 = vsel %vm227, %v191, 0
  %234 = vmatprep.subr.bf16.mxu0 %v189
  %235 = vmatpush1.bf16.msra.mxu0 %v188
  %236 = vmatprep.subr.bf16.mxu0 %v187
  %237 = vmatpush1.bf16.msra.mxu0 %v186
  %238 = vmatprep.subr.bf16.mxu0 %v185
  %239 = vmatpush1.bf16.msra.mxu0 %v184
  %240 = vmatprep.subr.bf16.mxu0 %v183
  %241 = vmatpush1.bf16.msra.mxu0 %v182
  %242 = vmatprep.subr.bf16.mxu0 %v181
  %243 = vmatpush1.bf16.msra.mxu0 %v180
  %244 = vmatprep.subr.bf16.mxu0 %v179
  %245 = vmatpush1.bf16.msra.mxu0 %v178
  %246 = vmatprep.subr.bf16.mxu0 %v177
  %247 = vmatpush1.bf16.msra.mxu0 %v176
  %248 = vmatprep.subr.bf16.mxu0 %v175
  %249 = vmatpush1.bf16.msra.mxu0 %v174
  %250 = vmatprep.subr.bf16.mxu0 0
  %251 = vmatpush2.bf16.msra.mxu0 0
  %252 = vmatprep.subr.bf16.mxu0 0
  %253 = vmatpush2.bf16.msra.mxu0 0
  %254 = vmatprep.subr.bf16.mxu0 0
  %255 = vmatpush2.bf16.msra.mxu0 0
  %256 = vmatprep.subr.bf16.mxu0 0
  %257 = vmatpush2.bf16.msra.mxu0 0
  %258 = vmatprep.subr.bf16.mxu0 0
  %259 = vmatpush2.bf16.msra.mxu0 0
  %260 = vmatprep.subr.bf16.mxu0 0
  %261 = vmatpush2.bf16.msra.mxu0 0
  %262 = vmatprep.subr.bf16.mxu0 0
  %263 = vmatpush2.bf16.msra.mxu0 0
  %264 = vmatprep.subr.bf16.mxu0 %v232
  %265 = vmatpush2.bf16.msra.mxu0 %v229
  %266 = vmatprep.mubr.bf16.mxu0 %v210
  %267 = vmatmul.mubr.bf16.gmra.mxu0 %v102
  %v268 = vpop.f32.mrf.mxu0
  %v269 = vadd.f32 0.0, %v268
  %v270 = vpop.f32.mrf.mxu0
  %v271 = vadd.f32 0.0, %v270
  %v272 = vpop.f32.mrf.mxu0
  %v273 = vadd.f32 0.0, %v272
  %v274 = vpop.f32.mrf.mxu0
  %v275 = vadd.f32 0.0, %v274
  %276 = vmatprep.mubr.bf16.mxu0 %v213
  %277 = vmatmul.mubr.bf16.gmra.mxu0 %v104
  %v278 = vpop.f32.mrf.mxu0
  %v279 = vadd.f32 0.0, %v278
  %v280 = vpop.f32.mrf.mxu0
  %v281 = vadd.f32 0.0, %v280
  %v282 = vpop.f32.mrf.mxu0
  %v283 = vadd.f32 0.0, %v282
  %v284 = vpop.f32.mrf.mxu0
  %v285 = vadd.f32 0.0, %v284
  %286 = vmatprep.mubr.bf16.mxu0 %v216
  %287 = vmatmul.mubr.bf16.gmra.mxu0 %v106
  %v288 = vpop.f32.mrf.mxu0
  %v289 = vadd.f32 0.0, %v288
  %v290 = vpop.f32.mrf.mxu0
  %v291 = vadd.f32 0.0, %v290
  %v292 = vpop.f32.mrf.mxu0
  %v293 = vadd.f32 0.0, %v292
  %v294 = vpop.f32.mrf.mxu0
  %v295 = vadd.f32 0.0, %v294
  %296 = vmatprep.mubr.bf16.mxu0 %v219
  %297 = vmatmul.mubr.bf16.gmra.mxu0 %v108
  %v298 = vpop.f32.mrf.mxu0
  %v299 = vadd.f32 0.0, %v298
  %v300 = vpop.f32.mrf.mxu0
  %v301 = vadd.f32 0.0, %v300
  %v302 = vpop.f32.mrf.mxu0
  %v303 = vadd.f32 0.0, %v302
  %v304 = vpop.f32.mrf.mxu0
  %v305 = vadd.f32 0.0, %v304
  %306 = vmatprep.mubr.bf16.mxu0 %v222
  %307 = vmatmul.mubr.bf16.gmra.mxu0 %v110
  %v308 = vpop.f32.mrf.mxu0
  %v309 = vadd.f32 0.0, %v308
  %v310 = vpop.f32.mrf.mxu0
  %v311 = vadd.f32 0.0, %v310
  %v312 = vpop.f32.mrf.mxu0
  %v313 = vadd.f32 0.0, %v312
  %v314 = vpop.f32.mrf.mxu0
  %v315 = vadd.f32 0.0, %v314
  %316 = vmatprep.mubr.bf16.mxu0 %v225
  %317 = vmatmul.mubr.bf16.gmra.mxu0 %v112
  %v318 = vpop.f32.mrf.mxu0
  %v319 = vadd.f32 0.0, %v318
  %v320 = vpop.f32.mrf.mxu0
  %v321 = vadd.f32 0.0, %v320
  %v322 = vpop.f32.mrf.mxu0
  %v323 = vadd.f32 0.0, %v322
  %v324 = vpop.f32.mrf.mxu0
  %v325 = vadd.f32 0.0, %v324
  %326 = vdwg.mxu0
  %v327 = vld [vmem:[%s1] sm:$0xff]
  %v328 = vld [vmem:[%s1 + $0x8] sm:$0xff]
  %v329 = vld [vmem:[%s1 + $0x10] sm:$0xff]
  %v330 = vld [vmem:[%s1 + $0x18] sm:$0xff]
  %v331 = vld [vmem:[%s1 + $0x20] sm:$0xff]
  %v332 = vld [vmem:[%s1 + $0x28] sm:$0xff]
  %v333 = vld [vmem:[%s1 + $0x30] sm:$0xff]
  %v334 = vld [vmem:[%s1 + $0x38] sm:$0xff]
  %v335 = vld [vmem:[%s1 + $0x40] sm:$0xff]
  %v336 = vld [vmem:[%s1 + $0x48] sm:$0xff]
  %v337 = vld [vmem:[%s1 + $0x50] sm:$0xff]
  %v338 = vld [vmem:[%s1 + $0x58] sm:$0xff]
  %v351 = vunpack.c.l.b16 %v327
  %v352 = vunpack.c.h.b16 %v327
  %v353 = vunpack.c.l.b16 %v328
  %v354 = vunpack.c.h.b16 %v328
  %v355 = vunpack.c.l.b16 %v329
  %v356 = vunpack.c.h.b16 %v329
  %v357 = vunpack.c.l.b16 %v330
  %v358 = vunpack.c.h.b16 %v330
  %v359 = vunpack.c.l.b16 %v331
  %v360 = vunpack.c.h.b16 %v331
  %v361 = vunpack.c.l.b16 %v332
  %v362 = vunpack.c.h.b16 %v332
  %v363 = vunpack.c.l.b16 %v333
  %v364 = vunpack.c.h.b16 %v333
  %v365 = vunpack.c.l.b16 %v334
  %v366 = vunpack.c.h.b16 %v334
  %v367 = vunpack.c.l.b16 %v335
  %v368 = vunpack.c.h.b16 %v335
  %v369 = vunpack.c.l.b16 %v336
  %v370 = vunpack.c.h.b16 %v336
  %v371 = vunpack.c.l.b16 %v337
  %v372 = vunpack.c.h.b16 %v337
  %v373 = vunpack.c.l.b16 %v338
  %v374 = vunpack.c.h.b16 %v338
  %v375 = vpack.c.b16 %v353, %v351
  %v376 = vpack.c.b16 %v354, %v352
  %v377 = vpack.c.b16 %v357, %v355
  %v378 = vpack.c.b16 %v358, %v356
  %v379 = vpack.c.b16 %v361, %v359
  %v380 = vpack.c.b16 %v362, %v360
  %v381 = vpack.c.b16 %v365, %v363
  %v382 = vpack.c.b16 %v366, %v364
  %v383 = vpack.c.b16 %v369, %v367
  %v384 = vpack.c.b16 %v370, %v368
  %v385 = vpack.c.b16 %v373, %v371
  %v386 = vpack.c.b16 %v374, %v372
  %v394 = vsel %vm208, %v376, 0
  %v397 = vsel %vm208, %v378, 0
  %v400 = vsel %vm208, %v380, 0
  %v403 = vsel %vm208, %v382, 0
  %v406 = vsel %vm208, %v384, 0
  %v409 = vsel %vm208, %v386, 0
  %411 = vmatprep.subr.bf16.mxu0 %v189
  %412 = vmatpush1.bf16.msra.mxu0 %v188
  %413 = vmatprep.subr.bf16.mxu0 %v187
  %414 = vmatpush1.bf16.msra.mxu0 %v186
  %415 = vmatprep.subr.bf16.mxu0 %v185
  %416 = vmatpush1.bf16.msra.mxu0 %v184
  %417 = vmatprep.subr.bf16.mxu0 %v183
  %418 = vmatpush1.bf16.msra.mxu0 %v182
  %419 = vmatprep.subr.bf16.mxu0 %v181
  %420 = vmatpush1.bf16.msra.mxu0 %v180
  %421 = vmatprep.subr.bf16.mxu0 %v179
  %422 = vmatpush1.bf16.msra.mxu0 %v178
  %423 = vmatprep.subr.bf16.mxu0 %v177
  %424 = vmatpush1.bf16.msra.mxu0 %v176
  %425 = vmatprep.subr.bf16.mxu0 %v175
  %426 = vmatpush1.bf16.msra.mxu0 %v174
  %427 = vmatprep.subr.bf16.mxu0 0
  %428 = vmatpush2.bf16.msra.mxu0 0
  %429 = vmatprep.subr.bf16.mxu0 0
  %430 = vmatpush2.bf16.msra.mxu0 0
  %431 = vmatprep.subr.bf16.mxu0 0
  %432 = vmatpush2.bf16.msra.mxu0 0
  %433 = vmatprep.subr.bf16.mxu0 0
  %434 = vmatpush2.bf16.msra.mxu0 0
  %435 = vmatprep.subr.bf16.mxu0 0
  %436 = vmatpush2.bf16.msra.mxu0 0
  %437 = vmatprep.subr.bf16.mxu0 0
  %438 = vmatpush2.bf16.msra.mxu0 0
  %439 = vmatprep.subr.bf16.mxu0 0
  %440 = vmatpush2.bf16.msra.mxu0 0
  %441 = vmatprep.subr.bf16.mxu0 %v232
  %442 = vmatpush2.bf16.msra.mxu0 %v229
  %443 = vmatprep.mubr.bf16.mxu0 %v394
  %444 = vmatmul.mubr.bf16.gmra.mxu0 %v375
  %v445 = vpop.f32.mrf.mxu0
  %v446 = vadd.f32 0.0, %v445
  %v447 = vpop.f32.mrf.mxu0
  %v448 = vadd.f32 0.0, %v447
  %v449 = vpop.f32.mrf.mxu0
  %v450 = vadd.f32 0.0, %v449
  %v451 = vpop.f32.mrf.mxu0
  %v452 = vadd.f32 0.0, %v451
  %453 = vmatprep.mubr.bf16.mxu0 %v397
  %454 = vmatmul.mubr.bf16.gmra.mxu0 %v377
  %v455 = vpop.f32.mrf.mxu0
  %v456 = vadd.f32 0.0, %v455
  %v457 = vpop.f32.mrf.mxu0
  %v458 = vadd.f32 0.0, %v457
  %v459 = vpop.f32.mrf.mxu0
  %v460 = vadd.f32 0.0, %v459
  %v461 = vpop.f32.mrf.mxu0
  %v462 = vadd.f32 0.0, %v461
  %463 = vmatprep.mubr.bf16.mxu0 %v400
  %464 = vmatmul.mubr.bf16.gmra.mxu0 %v379
  %v465 = vpop.f32.mrf.mxu0
  %v466 = vadd.f32 0.0, %v465
  %v467 = vpop.f32.mrf.mxu0
  %v468 = vadd.f32 0.0, %v467
  %v469 = vpop.f32.mrf.mxu0
  %v470 = vadd.f32 0.0, %v469
  %v471 = vpop.f32.mrf.mxu0
  %v472 = vadd.f32 0.0, %v471
  %473 = vmatprep.mubr.bf16.mxu0 %v403
  %474 = vmatmul.mubr.bf16.gmra.mxu0 %v381
  %v475 = vpop.f32.mrf.mxu0
  %v476 = vadd.f32 0.0, %v475
  %v477 = vpop.f32.mrf.mxu0
  %v478 = vadd.f32 0.0, %v477
  %v479 = vpop.f32.mrf.mxu0
  %v480 = vadd.f32 0.0, %v479
  %v481 = vpop.f32.mrf.mxu0
  %v482 = vadd.f32 0.0, %v481
  %483 = vmatprep.mubr.bf16.mxu0 %v406
  %484 = vmatmul.mubr.bf16.gmra.mxu0 %v383
  %v485 = vpop.f32.mrf.mxu0
  %v486 = vadd.f32 0.0, %v485
  %v487 = vpop.f32.mrf.mxu0
  %v488 = vadd.f32 0.0, %v487
  %v489 = vpop.f32.mrf.mxu0
  %v490 = vadd.f32 0.0, %v489
  %v491 = vpop.f32.mrf.mxu0
  %v492 = vadd.f32 0.0, %v491
  %493 = vmatprep.mubr.bf16.mxu0 %v409
  %494 = vmatmul.mubr.bf16.gmra.mxu0 %v385
  %v495 = vpop.f32.mrf.mxu0
  %v496 = vadd.f32 0.0, %v495
  %v497 = vpop.f32.mrf.mxu0
  %v498 = vadd.f32 0.0, %v497
  %v499 = vpop.f32.mrf.mxu0
  %v500 = vadd.f32 0.0, %v499
  %v501 = vpop.f32.mrf.mxu0
  %v502 = vadd.f32 0.0, %v501
  %503 = vdwg.mxu0
  %v504 = vmax.f32 %v269, %v446
  %v505 = vmax.f32 %v271, %v448
  %v506 = vmax.f32 %v273, %v450
  %v507 = vmax.f32 %v275, %v452
  %v508 = vmax.f32 %v279, %v456
  %v509 = vmax.f32 %v281, %v458
  %v510 = vmax.f32 %v283, %v460
  %v511 = vmax.f32 %v285, %v462
  %v512 = vmax.f32 %v289, %v466
  %v513 = vmax.f32 %v291, %v468
  %v514 = vmax.f32 %v293, %v470
  %v515 = vmax.f32 %v295, %v472
  %v516 = vmax.f32 %v299, %v476
  %v517 = vmax.f32 %v301, %v478
  %v518 = vmax.f32 %v303, %v480
  %v519 = vmax.f32 %v305, %v482
  %v520 = vmax.f32 %v309, %v486
  %v521 = vmax.f32 %v311, %v488
  %v522 = vmax.f32 %v313, %v490
  %v523 = vmax.f32 %v315, %v492
  %v524 = vmax.f32 %v319, %v496
  %v525 = vmax.f32 %v321, %v498
  %v526 = vmax.f32 %v323, %v500
  %v527 = vmax.f32 %v325, %v502
  %v528 = vmax.f32 %v504, %v505
  %v529 = vmax.f32 %v506, %v507
  %v530 = vmax.f32 %v508, %v509
  %v531 = vmax.f32 %v510, %v511
  %v532 = vmax.f32 %v512, %v513
  %v533 = vmax.f32 %v514, %v515
  %v534 = vmax.f32 %v516, %v517
  %v535 = vmax.f32 %v518, %v519
  %v536 = vmax.f32 %v520, %v521
  %v537 = vmax.f32 %v522, %v523
  %v538 = vmax.f32 %v524, %v525
  %v539 = vmax.f32 %v526, %v527
  %v540 = vld [vmem:[%s3] sm:$0x1]
  %v542 = vlaneseq
  %v543 = vshrl.u32 %v542, 7
  %v544 = vsub.s32 0, %v543
  %v545 = vrot.slane %v540, %v544
  %v547 = vadd.f32 %v528, %v545
  %v548 = vadd.f32 %v529, %v545
  %v549 = vadd.f32 %v530, %v545
  %v550 = vadd.f32 %v531, %v545
  %v551 = vadd.f32 %v532, %v545
  %v552 = vadd.f32 %v533, %v545
  %v553 = vadd.f32 %v534, %v545
  %v554 = vadd.f32 %v535, %v545
  %v555 = vadd.f32 %v536, %v545
  %v556 = vadd.f32 %v537, %v545
  %v557 = vadd.f32 %v538, %v545
  %v558 = vadd.f32 %v539, %v545
  %v559 = vmax.f32 %v547, 0.0
  %v560 = vmax.f32 %v548, 0.0
  %v561 = vmax.f32 %v549, 0.0
  %v562 = vmax.f32 %v550, 0.0
  %v563 = vmax.f32 %v551, 0.0
  %v564 = vmax.f32 %v552, 0.0
  %v565 = vmax.f32 %v553, 0.0
  %v566 = vmax.f32 %v554, 0.0
  %v567 = vmax.f32 %v555, 0.0
  %v568 = vmax.f32 %v556, 0.0
  %v569 = vmax.f32 %v557, 0.0
  %v570 = vmax.f32 %v558, 0.0
  %v571 = vpack.c.bf16 %v560, %v559
  %v572 = vpack.c.bf16 %v562, %v561
  %v573 = vpack.c.bf16 %v564, %v563
  %v574 = vpack.c.bf16 %v566, %v565
  %v575 = vpack.c.bf16 %v568, %v567
  %v576 = vpack.c.bf16 %v570, %v569
  %v577 = vld [vmem:[%s4] sm:$0xff]
  %v578 = vld [vmem:[%s4 + $0x8] sm:$0xff]
  %v579 = vld [vmem:[%s4 + $0x10] sm:$0xff]
  %v580 = vld [vmem:[%s4 + $0x18] sm:$0xff]
  %v581 = vld [vmem:[%s4 + $0x20] sm:$0xff]
  %v582 = vld [vmem:[%s4 + $0x28] sm:$0xff]
  %v583 = vld [vmem:[%s4 + $0x30] sm:$0xff]
  %v584 = vld [vmem:[%s4 + $0x38] sm:$0xff]
  %v585 = vld [vmem:[%s4 + $0x40] sm:$0xff]
  %v586 = vld [vmem:[%s4 + $0x48] sm:$0xff]
  %v587 = vld [vmem:[%s4 + $0x50] sm:$0xff]
  %v588 = vld [vmem:[%s4 + $0x58] sm:$0xff]
  %v589 = vld [vmem:[%s4 + $0x60] sm:$0xff]
  %v590 = vld [vmem:[%s4 + $0x68] sm:$0xff]
  %v591 = vld [vmem:[%s4 + $0x70] sm:$0xff]
  %v592 = vld [vmem:[%s4 + $0x78] sm:$0xff]
  %s593 = scalar_lea.vmem %s4, 128
  %v594 = vld [vmem:[%s593] sm:$0xff]
  %v595 = vld [vmem:[%s593 + $0x8] sm:$0xff]
  %v596 = vld [vmem:[%s593 + $0x10] sm:$0xff]
  %v597 = vld [vmem:[%s593 + $0x18] sm:$0xff]
  %v598 = vld [vmem:[%s593 + $0x20] sm:$0xff]
  %v599 = vld [vmem:[%s593 + $0x28] sm:$0xff]
  %v600 = vld [vmem:[%s593 + $0x30] sm:$0xff]
  %v601 = vld [vmem:[%s593 + $0x38] sm:$0xff]
  %v602 = vld [vmem:[%s593 + $0x40] sm:$0xff]
  %v603 = vld [vmem:[%s593 + $0x48] sm:$0xff]
  %v604 = vld [vmem:[%s593 + $0x50] sm:$0xff]
  %v605 = vld [vmem:[%s593 + $0x58] sm:$0xff]
  %v606 = vld [vmem:[%s593 + $0x60] sm:$0xff]
  %v607 = vld [vmem:[%s593 + $0x68] sm:$0xff]
  %v608 = vld [vmem:[%s593 + $0x70] sm:$0xff]
  %v609 = vld [vmem:[%s593 + $0x78] sm:$0xff]
  %vm615 = vcmask 1043456
  %v616 = vrot.slane %v571, 4
  %v617 = vrot.slane %v572, 4
  %v618 = vsel %vm615, %v616, %v617
  %v619 = vrot.slane %v573, 4
  %v620 = vsel %vm615, %v617, %v619
  %v621 = vrot.slane %v574, 4
  %v622 = vsel %vm615, %v619, %v621
  %v623 = vrot.slane %v575, 4
  %v624 = vsel %vm615, %v621, %v623
  %v645 = vunpack.c.l.b16 %v594
  %v646 = vunpack.c.h.b16 %v594
  %v647 = vunpack.c.l.b16 %v595
  %v648 = vunpack.c.h.b16 %v595
  %v649 = vunpack.c.l.b16 %v596
  %v650 = vunpack.c.h.b16 %v596
  %v651 = vunpack.c.l.b16 %v597
  %v652 = vunpack.c.h.b16 %v597
  %v653 = vunpack.c.l.b16 %v598
  %v654 = vunpack.c.h.b16 %v598
  %v655 = vunpack.c.l.b16 %v599
  %v656 = vunpack.c.h.b16 %v599
  %v657 = vunpack.c.l.b16 %v600
  %v658 = vunpack.c.h.b16 %v600
  %v659 = vunpack.c.l.b16 %v601
  %v660 = vunpack.c.h.b16 %v601
  %v661 = vunpack.c.l.b16 %v602
  %v662 = vunpack.c.h.b16 %v602
  %v663 = vunpack.c.l.b16 %v603
  %v664 = vunpack.c.h.b16 %v603
  %v665 = vunpack.c.l.b16 %v604
  %v666 = vunpack.c.h.b16 %v604
  %v667 = vunpack.c.l.b16 %v605
  %v668 = vunpack.c.h.b16 %v605
  %v669 = vunpack.c.l.b16 %v606
  %v670 = vunpack.c.h.b16 %v606
  %v671 = vunpack.c.l.b16 %v607
  %v672 = vunpack.c.h.b16 %v607
  %v673 = vunpack.c.l.b16 %v608
  %v674 = vunpack.c.h.b16 %v608
  %v675 = vunpack.c.l.b16 %v609
  %v676 = vunpack.c.h.b16 %v609
  %v677 = vpack.c.b16 %v647, %v645
  %v678 = vpack.c.b16 %v648, %v646
  %v679 = vpack.c.b16 %v651, %v649
  %v680 = vpack.c.b16 %v652, %v650
  %v681 = vpack.c.b16 %v655, %v653
  %v682 = vpack.c.b16 %v656, %v654
  %v683 = vpack.c.b16 %v659, %v657
  %v684 = vpack.c.b16 %v660, %v658
  %v685 = vpack.c.b16 %v663, %v661
  %v686 = vpack.c.b16 %v664, %v662
  %v687 = vpack.c.b16 %v667, %v665
  %v688 = vpack.c.b16 %v668, %v666
  %v689 = vpack.c.b16 %v671, %v669
  %v690 = vpack.c.b16 %v672, %v670
  %v691 = vpack.c.b16 %v675, %v673
  %v692 = vpack.c.b16 %v676, %v674
  %709 = vmatprep.subr.bf16.mxu0 %v692
  %710 = vmatpush1.bf16.msra.mxu0 %v691
  %711 = vmatprep.subr.bf16.mxu0 %v690
  %712 = vmatpush1.bf16.msra.mxu0 %v689
  %713 = vmatprep.subr.bf16.mxu0 %v688
  %714 = vmatpush1.bf16.msra.mxu0 %v687
  %715 = vmatprep.subr.bf16.mxu0 %v686
  %716 = vmatpush1.bf16.msra.mxu0 %v685
  %717 = vmatprep.subr.bf16.mxu0 %v684
  %718 = vmatpush1.bf16.msra.mxu0 %v683
  %719 = vmatprep.subr.bf16.mxu0 %v682
  %720 = vmatpush1.bf16.msra.mxu0 %v681
  %721 = vmatprep.subr.bf16.mxu0 %v680
  %722 = vmatpush1.bf16.msra.mxu0 %v679
  %723 = vmatprep.subr.bf16.mxu0 %v678
  %724 = vmatpush1.bf16.msra.mxu0 %v677
  %725 = vmatprep.subr.bf16.mxu0 0
  %726 = vmatpush2.bf16.msra.mxu0 0
  %727 = vmatprep.subr.bf16.mxu0 0
  %728 = vmatpush2.bf16.msra.mxu0 0
  %729 = vmatprep.subr.bf16.mxu0 0
  %730 = vmatpush2.bf16.msra.mxu0 0
  %731 = vmatprep.subr.bf16.mxu0 0
  %732 = vmatpush2.bf16.msra.mxu0 0
  %733 = vmatprep.subr.bf16.mxu0 0
  %734 = vmatpush2.bf16.msra.mxu0 0
  %735 = vmatprep.subr.bf16.mxu0 0
  %736 = vmatpush2.bf16.msra.mxu0 0
  %737 = vmatprep.subr.bf16.mxu0 0
  %738 = vmatpush2.bf16.msra.mxu0 0
  %739 = vmatprep.subr.bf16.mxu0 0
  %740 = vmatpush2.bf16.msra.mxu0 0
  %741 = vmatprep.mubr.bf16.mxu0 0
  %742 = vmatmul.mubr.bf16.gmra.mxu0 %v618
  %v743 = vpop.f32.mrf.mxu0
  %v744 = vadd.f32 0.0, %v743
  %v745 = vpop.f32.mrf.mxu0
  %v746 = vadd.f32 0.0, %v745
  %v747 = vpop.f32.mrf.mxu0
  %v748 = vadd.f32 0.0, %v747
  %v749 = vpop.f32.mrf.mxu0
  %v750 = vadd.f32 0.0, %v749
  %751 = vmatprep.mubr.bf16.mxu0 0
  %752 = vmatmul.mubr.bf16.gmra.mxu0 %v620
  %v753 = vpop.f32.mrf.mxu0
  %v754 = vadd.f32 0.0, %v753
  %v755 = vpop.f32.mrf.mxu0
  %v756 = vadd.f32 0.0, %v755
  %v757 = vpop.f32.mrf.mxu0
  %v758 = vadd.f32 0.0, %v757
  %v759 = vpop.f32.mrf.mxu0
  %v760 = vadd.f32 0.0, %v759
  %761 = vmatprep.mubr.bf16.mxu0 0
  %762 = vmatmul.mubr.bf16.gmra.mxu0 %v622
  %v763 = vpop.f32.mrf.mxu0
  %v764 = vadd.f32 0.0, %v763
  %v765 = vpop.f32.mrf.mxu0
  %v766 = vadd.f32 0.0, %v765
  %v767 = vpop.f32.mrf.mxu0
  %v768 = vadd.f32 0.0, %v767
  %v769 = vpop.f32.mrf.mxu0
  %v770 = vadd.f32 0.0, %v769
  %771 = vmatprep.mubr.bf16.mxu0 0
  %772 = vmatmul.mubr.bf16.gmra.mxu0 %v624
  %v773 = vpop.f32.mrf.mxu0
  %v774 = vadd.f32 0.0, %v773
  %v775 = vpop.f32.mrf.mxu0
  %v776 = vadd.f32 0.0, %v775
  %v777 = vpop.f32.mrf.mxu0
  %v778 = vadd.f32 0.0, %v777
  %v779 = vpop.f32.mrf.mxu0
  %v780 = vadd.f32 0.0, %v779
  %781 = vdwg.mxu0
  %v798 = vunpack.c.l.b16 %v577
  %v799 = vunpack.c.h.b16 %v577
  %v800 = vunpack.c.l.b16 %v578
  %v801 = vunpack.c.h.b16 %v578
  %v802 = vunpack.c.l.b16 %v579
  %v803 = vunpack.c.h.b16 %v579
  %v804 = vunpack.c.l.b16 %v580
  %v805 = vunpack.c.h.b16 %v580
  %v806 = vunpack.c.l.b16 %v581
  %v807 = vunpack.c.h.b16 %v581
  %v808 = vunpack.c.l.b16 %v582
  %v809 = vunpack.c.h.b16 %v582
  %v810 = vunpack.c.l.b16 %v583
  %v811 = vunpack.c.h.b16 %v583
  %v812 = vunpack.c.l.b16 %v584
  %v813 = vunpack.c.h.b16 %v584
  %v814 = vunpack.c.l.b16 %v585
  %v815 = vunpack.c.h.b16 %v585
  %v816 = vunpack.c.l.b16 %v586
  %v817 = vunpack.c.h.b16 %v586
  %v818 = vunpack.c.l.b16 %v587
  %v819 = vunpack.c.h.b16 %v587
  %v820 = vunpack.c.l.b16 %v588
  %v821 = vunpack.c.h.b16 %v588
  %v822 = vunpack.c.l.b16 %v589
  %v823 = vunpack.c.h.b16 %v589
  %v824 = vunpack.c.l.b16 %v590
  %v825 = vunpack.c.h.b16 %v590
  %v826 = vunpack.c.l.b16 %v591
  %v827 = vunpack.c.h.b16 %v591
  %v828 = vunpack.c.l.b16 %v592
  %v829 = vunpack.c.h.b16 %v592
  %v830 = vpack.c.b16 %v800, %v798
  %v831 = vpack.c.b16 %v801, %v799
  %v832 = vpack.c.b16 %v804, %v802
  %v833 = vpack.c.b16 %v805, %v803
  %v834 = vpack.c.b16 %v808, %v806
  %v835 = vpack.c.b16 %v809, %v807
  %v836 = vpack.c.b16 %v812, %v810
  %v837 = vpack.c.b16 %v813, %v811
  %v838 = vpack.c.b16 %v816, %v814
  %v839 = vpack.c.b16 %v817, %v815
  %v840 = vpack.c.b16 %v820, %v818
  %v841 = vpack.c.b16 %v821, %v819
  %v842 = vpack.c.b16 %v824, %v822
  %v843 = vpack.c.b16 %v825, %v823
  %v844 = vpack.c.b16 %v828, %v826
  %v845 = vpack.c.b16 %v829, %v827
  %862 = vmatprep.subr.bf16.mxu0 %v845
  %863 = vmatpush1.bf16.msra.mxu0 %v844
  %864 = vmatprep.subr.bf16.mxu0 %v843
  %865 = vmatpush1.bf16.msra.mxu0 %v842
  %866 = vmatprep.subr.bf16.mxu0 %v841
  %867 = vmatpush1.bf16.msra.mxu0 %v840
  %868 = vmatprep.subr.bf16.mxu0 %v839
  %869 = vmatpush1.bf16.msra.mxu0 %v838
  %870 = vmatprep.subr.bf16.mxu0 %v837
  %871 = vmatpush1.bf16.msra.mxu0 %v836
  %872 = vmatprep.subr.bf16.mxu0 %v835
  %873 = vmatpush1.bf16.msra.mxu0 %v834
  %874 = vmatprep.subr.bf16.mxu0 %v833
  %875 = vmatpush1.bf16.msra.mxu0 %v832
  %876 = vmatprep.subr.bf16.mxu0 %v831
  %877 = vmatpush1.bf16.msra.mxu0 %v830
  %878 = vmatprep.subr.bf16.mxu0 0
  %879 = vmatpush2.bf16.msra.mxu0 0
  %880 = vmatprep.subr.bf16.mxu0 0
  %881 = vmatpush2.bf16.msra.mxu0 0
  %882 = vmatprep.subr.bf16.mxu0 0
  %883 = vmatpush2.bf16.msra.mxu0 0
  %884 = vmatprep.subr.bf16.mxu0 0
  %885 = vmatpush2.bf16.msra.mxu0 0
  %886 = vmatprep.subr.bf16.mxu0 0
  %887 = vmatpush2.bf16.msra.mxu0 0
  %888 = vmatprep.subr.bf16.mxu0 0
  %889 = vmatpush2.bf16.msra.mxu0 0
  %890 = vmatprep.subr.bf16.mxu0 0
  %891 = vmatpush2.bf16.msra.mxu0 0
  %892 = vmatprep.subr.bf16.mxu0 0
  %893 = vmatpush2.bf16.msra.mxu0 0
  %894 = vmatprep.mubr.bf16.mxu0 0
  %895 = vmatmul.mubr.bf16.gmra.mxu0 %v571
  %v896 = vpop.f32.mrf.mxu0
  %v897 = vadd.f32 %v744, %v896
  %v898 = vpop.f32.mrf.mxu0
  %v899 = vadd.f32 %v746, %v898
  %v900 = vpop.f32.mrf.mxu0
  %v901 = vadd.f32 %v748, %v900
  %v902 = vpop.f32.mrf.mxu0
  %v903 = vadd.f32 %v750, %v902
  %904 = vmatprep.mubr.bf16.mxu0 0
  %905 = vmatmul.mubr.bf16.gmra.mxu0 %v572
  %v906 = vpop.f32.mrf.mxu0
  %v907 = vadd.f32 %v754, %v906
  %v908 = vpop.f32.mrf.mxu0
  %v909 = vadd.f32 %v756, %v908
  %v910 = vpop.f32.mrf.mxu0
  %v911 = vadd.f32 %v758, %v910
  %v912 = vpop.f32.mrf.mxu0
  %v913 = vadd.f32 %v760, %v912
  %914 = vmatprep.mubr.bf16.mxu0 0
  %915 = vmatmul.mubr.bf16.gmra.mxu0 %v573
  %v916 = vpop.f32.mrf.mxu0
  %v917 = vadd.f32 %v764, %v916
  %v918 = vpop.f32.mrf.mxu0
  %v919 = vadd.f32 %v766, %v918
  %v920 = vpop.f32.mrf.mxu0
  %v921 = vadd.f32 %v768, %v920
  %v922 = vpop.f32.mrf.mxu0
  %v923 = vadd.f32 %v770, %v922
  %924 = vmatprep.mubr.bf16.mxu0 0
  %925 = vmatmul.mubr.bf16.gmra.mxu0 %v574
  %v926 = vpop.f32.mrf.mxu0
  %v927 = vadd.f32 %v774, %v926
  %v928 = vpop.f32.mrf.mxu0
  %v929 = vadd.f32 %v776, %v928
  %v930 = vpop.f32.mrf.mxu0
  %v931 = vadd.f32 %v778, %v930
  %v932 = vpop.f32.mrf.mxu0
  %v933 = vadd.f32 %v780, %v932
  %934 = vdwg.mxu0
  %s935 = scalar_lea.vmem %s4, 256
  %v936 = vld [vmem:[%s935] sm:$0xff]
  %v937 = vld [vmem:[%s935 + $0x8] sm:$0xff]
  %v938 = vld [vmem:[%s935 + $0x10] sm:$0xff]
  %v939 = vld [vmem:[%s935 + $0x18] sm:$0xff]
  %v940 = vld [vmem:[%s935 + $0x20] sm:$0xff]
  %v941 = vld [vmem:[%s935 + $0x28] sm:$0xff]
  %v942 = vld [vmem:[%s935 + $0x30] sm:$0xff]
  %v943 = vld [vmem:[%s935 + $0x38] sm:$0xff]
  %v944 = vld [vmem:[%s935 + $0x40] sm:$0xff]
  %v945 = vld [vmem:[%s935 + $0x48] sm:$0xff]
  %v946 = vld [vmem:[%s935 + $0x50] sm:$0xff]
  %v947 = vld [vmem:[%s935 + $0x58] sm:$0xff]
  %v948 = vld [vmem:[%s935 + $0x60] sm:$0xff]
  %v949 = vld [vmem:[%s935 + $0x68] sm:$0xff]
  %v950 = vld [vmem:[%s935 + $0x70] sm:$0xff]
  %v951 = vld [vmem:[%s935 + $0x78] sm:$0xff]
  %v968 = vunpack.c.l.b16 %v936
  %v969 = vunpack.c.h.b16 %v936
  %v970 = vunpack.c.l.b16 %v937
  %v971 = vunpack.c.h.b16 %v937
  %v972 = vunpack.c.l.b16 %v938
  %v973 = vunpack.c.h.b16 %v938
  %v974 = vunpack.c.l.b16 %v939
  %v975 = vunpack.c.h.b16 %v939
  %v976 = vunpack.c.l.b16 %v940
  %v977 = vunpack.c.h.b16 %v940
  %v978 = vunpack.c.l.b16 %v941
  %v979 = vunpack.c.h.b16 %v941
  %v980 = vunpack.c.l.b16 %v942
  %v981 = vunpack.c.h.b16 %v942
  %v982 = vunpack.c.l.b16 %v943
  %v983 = vunpack.c.h.b16 %v943
  %v984 = vunpack.c.l.b16 %v944
  %v985 = vunpack.c.h.b16 %v944
  %v986 = vunpack.c.l.b16 %v945
  %v987 = vunpack.c.h.b16 %v945
  %v988 = vunpack.c.l.b16 %v946
  %v989 = vunpack.c.h.b16 %v946
  %v990 = vunpack.c.l.b16 %v947
  %v991 = vunpack.c.h.b16 %v947
  %v992 = vunpack.c.l.b16 %v948
  %v993 = vunpack.c.h.b16 %v948
  %v994 = vunpack.c.l.b16 %v949
  %v995 = vunpack.c.h.b16 %v949
  %v996 = vunpack.c.l.b16 %v950
  %v997 = vunpack.c.h.b16 %v950
  %v998 = vunpack.c.l.b16 %v951
  %v999 = vunpack.c.h.b16 %v951
  %v1000 = vpack.c.b16 %v970, %v968
  %v1001 = vpack.c.b16 %v971, %v969
  %v1002 = vpack.c.b16 %v974, %v972
  %v1003 = vpack.c.b16 %v975, %v973
  %v1004 = vpack.c.b16 %v978, %v976
  %v1005 = vpack.c.b16 %v979, %v977
  %v1006 = vpack.c.b16 %v982, %v980
  %v1007 = vpack.c.b16 %v983, %v981
  %v1008 = vpack.c.b16 %v986, %v984
  %v1009 = vpack.c.b16 %v987, %v985
  %v1010 = vpack.c.b16 %v990, %v988
  %v1011 = vpack.c.b16 %v991, %v989
  %v1012 = vpack.c.b16 %v994, %v992
  %v1013 = vpack.c.b16 %v995, %v993
  %v1014 = vpack.c.b16 %v998, %v996
  %v1015 = vpack.c.b16 %v999, %v997
  %1032 = vmatprep.subr.bf16.mxu0 %v1015
  %1033 = vmatpush1.bf16.msra.mxu0 %v1014
  %1034 = vmatprep.subr.bf16.mxu0 %v1013
  %1035 = vmatpush1.bf16.msra.mxu0 %v1012
  %1036 = vmatprep.subr.bf16.mxu0 %v1011
  %1037 = vmatpush1.bf16.msra.mxu0 %v1010
  %1038 = vmatprep.subr.bf16.mxu0 %v1009
  %1039 = vmatpush1.bf16.msra.mxu0 %v1008
  %1040 = vmatprep.subr.bf16.mxu0 %v1007
  %1041 = vmatpush1.bf16.msra.mxu0 %v1006
  %1042 = vmatprep.subr.bf16.mxu0 %v1005
  %1043 = vmatpush1.bf16.msra.mxu0 %v1004
  %1044 = vmatprep.subr.bf16.mxu0 %v1003
  %1045 = vmatpush1.bf16.msra.mxu0 %v1002
  %1046 = vmatprep.subr.bf16.mxu0 %v1001
  %1047 = vmatpush1.bf16.msra.mxu0 %v1000
  %1048 = vmatprep.subr.bf16.mxu0 0
  %1049 = vmatpush2.bf16.msra.mxu0 0
  %1050 = vmatprep.subr.bf16.mxu0 0
  %1051 = vmatpush2.bf16.msra.mxu0 0
  %1052 = vmatprep.subr.bf16.mxu0 0
  %1053 = vmatpush2.bf16.msra.mxu0 0
  %1054 = vmatprep.subr.bf16.mxu0 0
  %1055 = vmatpush2.bf16.msra.mxu0 0
  %1056 = vmatprep.subr.bf16.mxu0 0
  %1057 = vmatpush2.bf16.msra.mxu0 0
  %1058 = vmatprep.subr.bf16.mxu0 0
  %1059 = vmatpush2.bf16.msra.mxu0 0
  %1060 = vmatprep.subr.bf16.mxu0 0
  %1061 = vmatpush2.bf16.msra.mxu0 0
  %1062 = vmatprep.subr.bf16.mxu0 0
  %1063 = vmatpush2.bf16.msra.mxu0 0
  %1064 = vmatprep.mubr.bf16.mxu0 0
  %1065 = vmatmul.mubr.bf16.gmra.mxu0 %v572
  %v1066 = vpop.f32.mrf.mxu0
  %v1067 = vadd.f32 0.0, %v1066
  %v1068 = vpop.f32.mrf.mxu0
  %v1069 = vadd.f32 0.0, %v1068
  %v1070 = vpop.f32.mrf.mxu0
  %v1071 = vadd.f32 0.0, %v1070
  %v1072 = vpop.f32.mrf.mxu0
  %v1073 = vadd.f32 0.0, %v1072
  %1074 = vmatprep.mubr.bf16.mxu0 0
  %1075 = vmatmul.mubr.bf16.gmra.mxu0 %v573
  %v1076 = vpop.f32.mrf.mxu0
  %v1077 = vadd.f32 0.0, %v1076
  %v1078 = vpop.f32.mrf.mxu0
  %v1079 = vadd.f32 0.0, %v1078
  %v1080 = vpop.f32.mrf.mxu0
  %v1081 = vadd.f32 0.0, %v1080
  %v1082 = vpop.f32.mrf.mxu0
  %v1083 = vadd.f32 0.0, %v1082
  %1084 = vmatprep.mubr.bf16.mxu0 0
  %1085 = vmatmul.mubr.bf16.gmra.mxu0 %v574
  %v1086 = vpop.f32.mrf.mxu0
  %v1087 = vadd.f32 0.0, %v1086
  %v1088 = vpop.f32.mrf.mxu0
  %v1089 = vadd.f32 0.0, %v1088
  %v1090 = vpop.f32.mrf.mxu0
  %v1091 = vadd.f32 0.0, %v1090
  %v1092 = vpop.f32.mrf.mxu0
  %v1093 = vadd.f32 0.0, %v1092
  %1094 = vmatprep.mubr.bf16.mxu0 0
  %1095 = vmatmul.mubr.bf16.gmra.mxu0 %v575
  %v1096 = vpop.f32.mrf.mxu0
  %v1097 = vadd.f32 0.0, %v1096
  %v1098 = vpop.f32.mrf.mxu0
  %v1099 = vadd.f32 0.0, %v1098
  %v1100 = vpop.f32.mrf.mxu0
  %v1101 = vadd.f32 0.0, %v1100
  %v1102 = vpop.f32.mrf.mxu0
  %v1103 = vadd.f32 0.0, %v1102
  %1104 = vdwg.mxu0
  %v1105 = vadd.f32 %v897, %v1067
  %v1106 = vadd.f32 %v899, %v1069
  %v1107 = vadd.f32 %v901, %v1071
  %v1108 = vadd.f32 %v903, %v1073
  %v1109 = vadd.f32 %v907, %v1077
  %v1110 = vadd.f32 %v909, %v1079
  %v1111 = vadd.f32 %v911, %v1081
  %v1112 = vadd.f32 %v913, %v1083
  %v1113 = vadd.f32 %v917, %v1087
  %v1114 = vadd.f32 %v919, %v1089
  %v1115 = vadd.f32 %v921, %v1091
  %v1116 = vadd.f32 %v923, %v1093
  %v1117 = vadd.f32 %v927, %v1097
  %v1118 = vadd.f32 %v929, %v1099
  %v1119 = vadd.f32 %v931, %v1101
  %v1120 = vadd.f32 %v933, %v1103
  %s1121 = scalar_lea.vmem %s4, 384
  %v1122 = vld [vmem:[%s1121] sm:$0xff]
  %v1123 = vld [vmem:[%s1121 + $0x8] sm:$0xff]
  %v1124 = vld [vmem:[%s1121 + $0x10] sm:$0xff]
  %v1125 = vld [vmem:[%s1121 + $0x18] sm:$0xff]
  %v1126 = vld [vmem:[%s1121 + $0x20] sm:$0xff]
  %v1127 = vld [vmem:[%s1121 + $0x28] sm:$0xff]
  %v1128 = vld [vmem:[%s1121 + $0x30] sm:$0xff]
  %v1129 = vld [vmem:[%s1121 + $0x38] sm:$0xff]
  %v1130 = vld [vmem:[%s1121 + $0x40] sm:$0xff]
  %v1131 = vld [vmem:[%s1121 + $0x48] sm:$0xff]
  %v1132 = vld [vmem:[%s1121 + $0x50] sm:$0xff]
  %v1133 = vld [vmem:[%s1121 + $0x58] sm:$0xff]
  %v1134 = vld [vmem:[%s1121 + $0x60] sm:$0xff]
  %v1135 = vld [vmem:[%s1121 + $0x68] sm:$0xff]
  %v1136 = vld [vmem:[%s1121 + $0x70] sm:$0xff]
  %v1137 = vld [vmem:[%s1121 + $0x78] sm:$0xff]
  %v1139 = vrot.slane %v576, 4
  %v1140 = vsel %vm615, %v623, %v1139
  %v1158 = vunpack.c.l.b16 %v1122
  %v1159 = vunpack.c.h.b16 %v1122
  %v1160 = vunpack.c.l.b16 %v1123
  %v1161 = vunpack.c.h.b16 %v1123
  %v1162 = vunpack.c.l.b16 %v1124
  %v1163 = vunpack.c.h.b16 %v1124
  %v1164 = vunpack.c.l.b16 %v1125
  %v1165 = vunpack.c.h.b16 %v1125
  %v1166 = vunpack.c.l.b16 %v1126
  %v1167 = vunpack.c.h.b16 %v1126
  %v1168 = vunpack.c.l.b16 %v1127
  %v1169 = vunpack.c.h.b16 %v1127
  %v1170 = vunpack.c.l.b16 %v1128
  %v1171 = vunpack.c.h.b16 %v1128
  %v1172 = vunpack.c.l.b16 %v1129
  %v1173 = vunpack.c.h.b16 %v1129
  %v1174 = vunpack.c.l.b16 %v1130
  %v1175 = vunpack.c.h.b16 %v1130
  %v1176 = vunpack.c.l.b16 %v1131
  %v1177 = vunpack.c.h.b16 %v1131
  %v1178 = vunpack.c.l.b16 %v1132
  %v1179 = vunpack.c.h.b16 %v1132
  %v1180 = vunpack.c.l.b16 %v1133
  %v1181 = vunpack.c.h.b16 %v1133
  %v1182 = vunpack.c.l.b16 %v1134
  %v1183 = vunpack.c.h.b16 %v1134
  %v1184 = vunpack.c.l.b16 %v1135
  %v1185 = vunpack.c.h.b16 %v1135
  %v1186 = vunpack.c.l.b16 %v1136
  %v1187 = vunpack.c.h.b16 %v1136
  %v1188 = vunpack.c.l.b16 %v1137
  %v1189 = vunpack.c.h.b16 %v1137
  %v1190 = vpack.c.b16 %v1160, %v1158
  %v1191 = vpack.c.b16 %v1161, %v1159
  %v1192 = vpack.c.b16 %v1164, %v1162
  %v1193 = vpack.c.b16 %v1165, %v1163
  %v1194 = vpack.c.b16 %v1168, %v1166
  %v1195 = vpack.c.b16 %v1169, %v1167
  %v1196 = vpack.c.b16 %v1172, %v1170
  %v1197 = vpack.c.b16 %v1173, %v1171
  %v1198 = vpack.c.b16 %v1176, %v1174
  %v1199 = vpack.c.b16 %v1177, %v1175
  %v1200 = vpack.c.b16 %v1180, %v1178
  %v1201 = vpack.c.b16 %v1181, %v1179
  %v1202 = vpack.c.b16 %v1184, %v1182
  %v1203 = vpack.c.b16 %v1185, %v1183
  %v1204 = vpack.c.b16 %v1188, %v1186
  %v1205 = vpack.c.b16 %v1189, %v1187
  %1222 = vmatprep.subr.bf16.mxu0 %v1205
  %1223 = vmatpush1.bf16.msra.mxu0 %v1204
  %1224 = vmatprep.subr.bf16.mxu0 %v1203
  %1225 = vmatpush1.bf16.msra.mxu0 %v1202
  %1226 = vmatprep.subr.bf16.mxu0 %v1201
  %1227 = vmatpush1.bf16.msra.mxu0 %v1200
  %1228 = vmatprep.subr.bf16.mxu0 %v1199
  %1229 = vmatpush1.bf16.msra.mxu0 %v1198
  %1230 = vmatprep.subr.bf16.mxu0 %v1197
  %1231 = vmatpush1.bf16.msra.mxu0 %v1196
  %1232 = vmatprep.subr.bf16.mxu0 %v1195
  %1233 = vmatpush1.bf16.msra.mxu0 %v1194
  %1234 = vmatprep.subr.bf16.mxu0 %v1193
  %1235 = vmatpush1.bf16.msra.mxu0 %v1192
  %1236 = vmatprep.subr.bf16.mxu0 %v1191
  %1237 = vmatpush1.bf16.msra.mxu0 %v1190
  %1238 = vmatprep.subr.bf16.mxu0 0
  %1239 = vmatpush2.bf16.msra.mxu0 0
  %1240 = vmatprep.subr.bf16.mxu0 0
  %1241 = vmatpush2.bf16.msra.mxu0 0
  %1242 = vmatprep.subr.bf16.mxu0 0
  %1243 = vmatpush2.bf16.msra.mxu0 0
  %1244 = vmatprep.subr.bf16.mxu0 0
  %1245 = vmatpush2.bf16.msra.mxu0 0
  %1246 = vmatprep.subr.bf16.mxu0 0
  %1247 = vmatpush2.bf16.msra.mxu0 0
  %1248 = vmatprep.subr.bf16.mxu0 0
  %1249 = vmatpush2.bf16.msra.mxu0 0
  %1250 = vmatprep.subr.bf16.mxu0 0
  %1251 = vmatpush2.bf16.msra.mxu0 0
  %1252 = vmatprep.subr.bf16.mxu0 0
  %1253 = vmatpush2.bf16.msra.mxu0 0
  %1254 = vmatprep.mubr.bf16.mxu0 0
  %1255 = vmatmul.mubr.bf16.gmra.mxu0 %v620
  %v1256 = vpop.f32.mrf.mxu0
  %v1257 = vadd.f32 0.0, %v1256
  %v1258 = vpop.f32.mrf.mxu0
  %v1259 = vadd.f32 0.0, %v1258
  %v1260 = vpop.f32.mrf.mxu0
  %v1261 = vadd.f32 0.0, %v1260
  %v1262 = vpop.f32.mrf.mxu0
  %v1263 = vadd.f32 0.0, %v1262
  %1264 = vmatprep.mubr.bf16.mxu0 0
  %1265 = vmatmul.mubr.bf16.gmra.mxu0 %v622
  %v1266 = vpop.f32.mrf.mxu0
  %v1267 = vadd.f32 0.0, %v1266
  %v1268 = vpop.f32.mrf.mxu0
  %v1269 = vadd.f32 0.0, %v1268
  %v1270 = vpop.f32.mrf.mxu0
  %v1271 = vadd.f32 0.0, %v1270
  %v1272 = vpop.f32.mrf.mxu0
  %v1273 = vadd.f32 0.0, %v1272
  %1274 = vmatprep.mubr.bf16.mxu0 0
  %1275 = vmatmul.mubr.bf16.gmra.mxu0 %v624
  %v1276 = vpop.f32.mrf.mxu0
  %v1277 = vadd.f32 0.0, %v1276
  %v1278 = vpop.f32.mrf.mxu0
  %v1279 = vadd.f32 0.0, %v1278
  %v1280 = vpop.f32.mrf.mxu0
  %v1281 = vadd.f32 0.0, %v1280
  %v1282 = vpop.f32.mrf.mxu0
  %v1283 = vadd.f32 0.0, %v1282
  %1284 = vmatprep.mubr.bf16.mxu0 0
  %1285 = vmatmul.mubr.bf16.gmra.mxu0 %v1140
  %v1286 = vpop.f32.mrf.mxu0
  %v1287 = vadd.f32 0.0, %v1286
  %v1288 = vpop.f32.mrf.mxu0
  %v1289 = vadd.f32 0.0, %v1288
  %v1290 = vpop.f32.mrf.mxu0
  %v1291 = vadd.f32 0.0, %v1290
  %v1292 = vpop.f32.mrf.mxu0
  %v1293 = vadd.f32 0.0, %v1292
  %1294 = vdwg.mxu0
  %v1295 = vadd.f32 %v1105, %v1257
  %v1296 = vadd.f32 %v1106, %v1259
  %v1297 = vadd.f32 %v1107, %v1261
  %v1298 = vadd.f32 %v1108, %v1263
  %v1299 = vadd.f32 %v1109, %v1267
  %v1300 = vadd.f32 %v1110, %v1269
  %v1301 = vadd.f32 %v1111, %v1271
  %v1302 = vadd.f32 %v1112, %v1273
  %v1303 = vadd.f32 %v1113, %v1277
  %v1304 = vadd.f32 %v1114, %v1279
  %v1305 = vadd.f32 %v1115, %v1281
  %v1306 = vadd.f32 %v1116, %v1283
  %v1307 = vadd.f32 %v1117, %v1287
  %v1308 = vadd.f32 %v1118, %v1289
  %v1309 = vadd.f32 %v1119, %v1291
  %v1310 = vadd.f32 %v1120, %v1293
  %s1311 = scalar_lea.vmem %s4, 512
  %v1312 = vld [vmem:[%s1311] sm:$0xff]
  %v1313 = vld [vmem:[%s1311 + $0x8] sm:$0xff]
  %v1314 = vld [vmem:[%s1311 + $0x10] sm:$0xff]
  %v1315 = vld [vmem:[%s1311 + $0x18] sm:$0xff]
  %v1316 = vld [vmem:[%s1311 + $0x20] sm:$0xff]
  %v1317 = vld [vmem:[%s1311 + $0x28] sm:$0xff]
  %v1318 = vld [vmem:[%s1311 + $0x30] sm:$0xff]
  %v1319 = vld [vmem:[%s1311 + $0x38] sm:$0xff]
  %v1320 = vld [vmem:[%s1311 + $0x40] sm:$0xff]
  %v1321 = vld [vmem:[%s1311 + $0x48] sm:$0xff]
  %v1322 = vld [vmem:[%s1311 + $0x50] sm:$0xff]
  %v1323 = vld [vmem:[%s1311 + $0x58] sm:$0xff]
  %v1324 = vld [vmem:[%s1311 + $0x60] sm:$0xff]
  %v1325 = vld [vmem:[%s1311 + $0x68] sm:$0xff]
  %v1326 = vld [vmem:[%s1311 + $0x70] sm:$0xff]
  %v1327 = vld [vmem:[%s1311 + $0x78] sm:$0xff]
  %v1344 = vunpack.c.l.b16 %v1312
  %v1345 = vunpack.c.h.b16 %v1312
  %v1346 = vunpack.c.l.b16 %v1313
  %v1347 = vunpack.c.h.b16 %v1313
  %v1348 = vunpack.c.l.b16 %v1314
  %v1349 = vunpack.c.h.b16 %v1314
  %v1350 = vunpack.c.l.b16 %v1315
  %v1351 = vunpack.c.h.b16 %v1315
  %v1352 = vunpack.c.l.b16 %v1316
  %v1353 = vunpack.c.h.b16 %v1316
  %v1354 = vunpack.c.l.b16 %v1317
  %v1355 = vunpack.c.h.b16 %v1317
  %v1356 = vunpack.c.l.b16 %v1318
  %v1357 = vunpack.c.h.b16 %v1318
  %v1358 = vunpack.c.l.b16 %v1319
  %v1359 = vunpack.c.h.b16 %v1319
  %v1360 = vunpack.c.l.b16 %v1320
  %v1361 = vunpack.c.h.b16 %v1320
  %v1362 = vunpack.c.l.b16 %v1321
  %v1363 = vunpack.c.h.b16 %v1321
  %v1364 = vunpack.c.l.b16 %v1322
  %v1365 = vunpack.c.h.b16 %v1322
  %v1366 = vunpack.c.l.b16 %v1323
  %v1367 = vunpack.c.h.b16 %v1323
  %v1368 = vunpack.c.l.b16 %v1324
  %v1369 = vunpack.c.h.b16 %v1324
  %v1370 = vunpack.c.l.b16 %v1325
  %v1371 = vunpack.c.h.b16 %v1325
  %v1372 = vunpack.c.l.b16 %v1326
  %v1373 = vunpack.c.h.b16 %v1326
  %v1374 = vunpack.c.l.b16 %v1327
  %v1375 = vunpack.c.h.b16 %v1327
  %v1376 = vpack.c.b16 %v1346, %v1344
  %v1377 = vpack.c.b16 %v1347, %v1345
  %v1378 = vpack.c.b16 %v1350, %v1348
  %v1379 = vpack.c.b16 %v1351, %v1349
  %v1380 = vpack.c.b16 %v1354, %v1352
  %v1381 = vpack.c.b16 %v1355, %v1353
  %v1382 = vpack.c.b16 %v1358, %v1356
  %v1383 = vpack.c.b16 %v1359, %v1357
  %v1384 = vpack.c.b16 %v1362, %v1360
  %v1385 = vpack.c.b16 %v1363, %v1361
  %v1386 = vpack.c.b16 %v1366, %v1364
  %v1387 = vpack.c.b16 %v1367, %v1365
  %v1388 = vpack.c.b16 %v1370, %v1368
  %v1389 = vpack.c.b16 %v1371, %v1369
  %v1390 = vpack.c.b16 %v1374, %v1372
  %v1391 = vpack.c.b16 %v1375, %v1373
  %1408 = vmatprep.subr.bf16.mxu0 %v1391
  %1409 = vmatpush1.bf16.msra.mxu0 %v1390
  %1410 = vmatprep.subr.bf16.mxu0 %v1389
  %1411 = vmatpush1.bf16.msra.mxu0 %v1388
  %1412 = vmatprep.subr.bf16.mxu0 %v1387
  %1413 = vmatpush1.bf16.msra.mxu0 %v1386
  %1414 = vmatprep.subr.bf16.mxu0 %v1385
  %1415 = vmatpush1.bf16.msra.mxu0 %v1384
  %1416 = vmatprep.subr.bf16.mxu0 %v1383
  %1417 = vmatpush1.bf16.msra.mxu0 %v1382
  %1418 = vmatprep.subr.bf16.mxu0 %v1381
  %1419 = vmatpush1.bf16.msra.mxu0 %v1380
  %1420 = vmatprep.subr.bf16.mxu0 %v1379
  %1421 = vmatpush1.bf16.msra.mxu0 %v1378
  %1422 = vmatprep.subr.bf16.mxu0 %v1377
  %1423 = vmatpush1.bf16.msra.mxu0 %v1376
  %1424 = vmatprep.subr.bf16.mxu0 0
  %1425 = vmatpush2.bf16.msra.mxu0 0
  %1426 = vmatprep.subr.bf16.mxu0 0
  %1427 = vmatpush2.bf16.msra.mxu0 0
  %1428 = vmatprep.subr.bf16.mxu0 0
  %1429 = vmatpush2.bf16.msra.mxu0 0
  %1430 = vmatprep.subr.bf16.mxu0 0
  %1431 = vmatpush2.bf16.msra.mxu0 0
  %1432 = vmatprep.subr.bf16.mxu0 0
  %1433 = vmatpush2.bf16.msra.mxu0 0
  %1434 = vmatprep.subr.bf16.mxu0 0
  %1435 = vmatpush2.bf16.msra.mxu0 0
  %1436 = vmatprep.subr.bf16.mxu0 0
  %1437 = vmatpush2.bf16.msra.mxu0 0
  %1438 = vmatprep.subr.bf16.mxu0 0
  %1439 = vmatpush2.bf16.msra.mxu0 0
  %1440 = vmatprep.mubr.bf16.mxu0 0
  %1441 = vmatmul.mubr.bf16.gmra.mxu0 %v573
  %v1442 = vpop.f32.mrf.mxu0
  %v1443 = vadd.f32 0.0, %v1442
  %v1444 = vpop.f32.mrf.mxu0
  %v1445 = vadd.f32 0.0, %v1444
  %v1446 = vpop.f32.mrf.mxu0
  %v1447 = vadd.f32 0.0, %v1446
  %v1448 = vpop.f32.mrf.mxu0
  %v1449 = vadd.f32 0.0, %v1448
  %1450 = vmatprep.mubr.bf16.mxu0 0
  %1451 = vmatmul.mubr.bf16.gmra.mxu0 %v574
  %v1452 = vpop.f32.mrf.mxu0
  %v1453 = vadd.f32 0.0, %v1452
  %v1454 = vpop.f32.mrf.mxu0
  %v1455 = vadd.f32 0.0, %v1454
  %v1456 = vpop.f32.mrf.mxu0
  %v1457 = vadd.f32 0.0, %v1456
  %v1458 = vpop.f32.mrf.mxu0
  %v1459 = vadd.f32 0.0, %v1458
  %1460 = vmatprep.mubr.bf16.mxu0 0
  %1461 = vmatmul.mubr.bf16.gmra.mxu0 %v575
  %v1462 = vpop.f32.mrf.mxu0
  %v1463 = vadd.f32 0.0, %v1462
  %v1464 = vpop.f32.mrf.mxu0
  %v1465 = vadd.f32 0.0, %v1464
  %v1466 = vpop.f32.mrf.mxu0
  %v1467 = vadd.f32 0.0, %v1466
  %v1468 = vpop.f32.mrf.mxu0
  %v1469 = vadd.f32 0.0, %v1468
  %1470 = vmatprep.mubr.bf16.mxu0 0
  %1471 = vmatmul.mubr.bf16.gmra.mxu0 %v576
  %v1472 = vpop.f32.mrf.mxu0
  %v1473 = vadd.f32 0.0, %v1472
  %v1474 = vpop.f32.mrf.mxu0
  %v1475 = vadd.f32 0.0, %v1474
  %v1476 = vpop.f32.mrf.mxu0
  %v1477 = vadd.f32 0.0, %v1476
  %v1478 = vpop.f32.mrf.mxu0
  %v1479 = vadd.f32 0.0, %v1478
  %1480 = vdwg.mxu0
  %v1481 = vadd.f32 %v1295, %v1443
  %v1482 = vadd.f32 %v1296, %v1445
  %v1483 = vadd.f32 %v1297, %v1447
  %v1484 = vadd.f32 %v1298, %v1449
  %v1485 = vadd.f32 %v1299, %v1453
  %v1486 = vadd.f32 %v1300, %v1455
  %v1487 = vadd.f32 %v1301, %v1457
  %v1488 = vadd.f32 %v1302, %v1459
  %v1489 = vadd.f32 %v1303, %v1463
  %v1490 = vadd.f32 %v1304, %v1465
  %v1491 = vadd.f32 %v1305, %v1467
  %v1492 = vadd.f32 %v1306, %v1469
  %v1493 = vadd.f32 %v1307, %v1473
  %v1494 = vadd.f32 %v1308, %v1475
  %v1495 = vadd.f32 %v1309, %v1477
  %v1496 = vadd.f32 %v1310, %v1479
  %v1497 = vmax.f32 %v1481, %v1482
  %v1498 = vmax.f32 %v1483, %v1484
  %v1499 = vmax.f32 %v1485, %v1486
  %v1500 = vmax.f32 %v1487, %v1488
  %v1501 = vmax.f32 %v1489, %v1490
  %v1502 = vmax.f32 %v1491, %v1492
  %v1503 = vmax.f32 %v1493, %v1494
  %v1504 = vmax.f32 %v1495, %v1496
  %v1505 = vld [vmem:[%s5] sm:$0x1]
  %v1506 = vmax.f32 %v1497, %v1498
  %v1508 = vlaneseq
  %v1509 = vshrl.u32 %v1508, 7
  %v1510 = vsub.s32 0, %v1509
  %v1511 = vrot.slane %v1505, %v1510
  %v1513 = vadd.f32 %v1506, %v1511
  %v1514 = vmax.f32 %v1513, 0.0
  %v1515 = vpack.c.bf16 %v1514, %v1514
  %v1516 = vld [vmem:[%s6] sm:$0xf]
  %v1517 = vld [vmem:[%s6 + $0x4] sm:$0xf]
  %v1518 = vld [vmem:[%s6 + $0x8] sm:$0xf]
  %v1519 = vld [vmem:[%s6 + $0xc] sm:$0xf]
  %v1520 = vld [vmem:[%s6 + $0x10] sm:$0xf]
  %v1521 = vld [vmem:[%s6 + $0x14] sm:$0xf]
  %v1522 = vld [vmem:[%s6 + $0x18] sm:$0xf]
  %v1523 = vld [vmem:[%s6 + $0x1c] sm:$0xf]
  %v1524 = vld [vmem:[%s6 + $0x20] sm:$0xf]
  %v1525 = vld [vmem:[%s6 + $0x24] sm:$0xf]
  %v1526 = vld [vmem:[%s6 + $0x28] sm:$0xf]
  %v1527 = vld [vmem:[%s6 + $0x2c] sm:$0xf]
  %v1528 = vld [vmem:[%s6 + $0x30] sm:$0xf]
  %v1529 = vld [vmem:[%s6 + $0x34] sm:$0xf]
  %v1530 = vld [vmem:[%s6 + $0x38] sm:$0xf]
  %v1531 = vld [vmem:[%s6 + $0x3c] sm:$0xf]
  %v1532 = vmax.f32 %v1499, %v1500
  %v1533 = vadd.f32 %v1532, %v1511
  %v1534 = vmax.f32 %v1533, 0.0
  %v1535 = vpack.c.bf16 %v1534, %v1534
  %s1536 = scalar_lea.vmem %s6, 64
  %v1537 = vld [vmem:[%s1536] sm:$0xf]
  %v1538 = vld [vmem:[%s1536 + $0x4] sm:$0xf]
  %v1539 = vld [vmem:[%s1536 + $0x8] sm:$0xf]
  %v1540 = vld [vmem:[%s1536 + $0xc] sm:$0xf]
  %v1541 = vld [vmem:[%s1536 + $0x10] sm:$0xf]
  %v1542 = vld [vmem:[%s1536 + $0x14] sm:$0xf]
  %v1543 = vld [vmem:[%s1536 + $0x18] sm:$0xf]
  %v1544 = vld [vmem:[%s1536 + $0x1c] sm:$0xf]
  %v1545 = vld [vmem:[%s1536 + $0x20] sm:$0xf]
  %v1546 = vld [vmem:[%s1536 + $0x24] sm:$0xf]
  %v1547 = vld [vmem:[%s1536 + $0x28] sm:$0xf]
  %v1548 = vld [vmem:[%s1536 + $0x2c] sm:$0xf]
  %v1549 = vld [vmem:[%s1536 + $0x30] sm:$0xf]
  %v1550 = vld [vmem:[%s1536 + $0x34] sm:$0xf]
  %v1551 = vld [vmem:[%s1536 + $0x38] sm:$0xf]
  %v1552 = vld [vmem:[%s1536 + $0x3c] sm:$0xf]
  %v1569 = vunpack.c.l.b16 %v1537
  %v1570 = vunpack.c.l.b16 %v1538
  %v1571 = vunpack.c.l.b16 %v1539
  %v1572 = vunpack.c.l.b16 %v1540
  %v1573 = vunpack.c.l.b16 %v1541
  %v1574 = vunpack.c.l.b16 %v1542
  %v1575 = vunpack.c.l.b16 %v1543
  %v1576 = vunpack.c.l.b16 %v1544
  %v1577 = vunpack.c.l.b16 %v1545
  %v1578 = vunpack.c.l.b16 %v1546
  %v1579 = vunpack.c.l.b16 %v1547
  %v1580 = vunpack.c.l.b16 %v1548
  %v1581 = vunpack.c.l.b16 %v1549
  %v1582 = vunpack.c.l.b16 %v1550
  %v1583 = vunpack.c.l.b16 %v1551
  %v1584 = vunpack.c.l.b16 %v1552
  %v1585 = vpack.c.b16 %v1570, %v1569
  %v1586 = vpack.c.b16 %v1572, %v1571
  %v1587 = vpack.c.b16 %v1574, %v1573
  %v1588 = vpack.c.b16 %v1576, %v1575
  %v1589 = vpack.c.b16 %v1578, %v1577
  %v1590 = vpack.c.b16 %v1580, %v1579
  %v1591 = vpack.c.b16 %v1582, %v1581
  %v1592 = vpack.c.b16 %v1584, %v1583
  %1601 = vmatprep.subr.bf16.mxu0 0
  %1602 = vmatpush1.bf16.msra.mxu0 %v1592
  %1603 = vmatprep.subr.bf16.mxu0 0
  %1604 = vmatpush1.bf16.msra.mxu0 %v1591
  %1605 = vmatprep.subr.bf16.mxu0 0
  %1606 = vmatpush1.bf16.msra.mxu0 %v1590
  %1607 = vmatprep.subr.bf16.mxu0 0
  %1608 = vmatpush1.bf16.msra.mxu0 %v1589
  %1609 = vmatprep.subr.bf16.mxu0 0
  %1610 = vmatpush1.bf16.msra.mxu0 %v1588
  %1611 = vmatprep.subr.bf16.mxu0 0
  %1612 = vmatpush1.bf16.msra.mxu0 %v1587
  %1613 = vmatprep.subr.bf16.mxu0 0
  %1614 = vmatpush1.bf16.msra.mxu0 %v1586
  %1615 = vmatprep.subr.bf16.mxu0 0
  %1616 = vmatpush1.bf16.msra.mxu0 %v1585
  %1617 = vmatprep.subr.bf16.mxu0 0
  %1618 = vmatpush2.bf16.msra.mxu0 0
  %1619 = vmatprep.subr.bf16.mxu0 0
  %1620 = vmatpush2.bf16.msra.mxu0 0
  %1621 = vmatprep.subr.bf16.mxu0 0
  %1622 = vmatpush2.bf16.msra.mxu0 0
  %1623 = vmatprep.subr.bf16.mxu0 0
  %1624 = vmatpush2.bf16.msra.mxu0 0
  %1625 = vmatprep.subr.bf16.mxu0 0
  %1626 = vmatpush2.bf16.msra.mxu0 0
  %1627 = vmatprep.subr.bf16.mxu0 0
  %1628 = vmatpush2.bf16.msra.mxu0 0
  %1629 = vmatprep.subr.bf16.mxu0 0
  %1630 = vmatpush2.bf16.msra.mxu0 0
  %1631 = vmatprep.subr.bf16.mxu0 0
  %1632 = vmatpush2.bf16.msra.mxu0 0
  %1633 = vmatprep.mubr.bf16.mxu0 0
  %1634 = vmatmul.mubr.bf16.gmra.mxu0 %v1535
  %v1635 = vpop.f32.mrf.mxu0
  %v1636 = vadd.f32 0.0, %v1635
  %v1637 = vpop.f32.mrf.mxu0
  %v1638 = vpop.f32.mrf.mxu0
  %v1639 = vpop.f32.mrf.mxu0
  %1640 = vdwg.mxu0
  %v1657 = vunpack.c.l.b16 %v1516
  %v1658 = vunpack.c.l.b16 %v1517
  %v1659 = vunpack.c.l.b16 %v1518
  %v1660 = vunpack.c.l.b16 %v1519
  %v1661 = vunpack.c.l.b16 %v1520
  %v1662 = vunpack.c.l.b16 %v1521
  %v1663 = vunpack.c.l.b16 %v1522
  %v1664 = vunpack.c.l.b16 %v1523
  %v1665 = vunpack.c.l.b16 %v1524
  %v1666 = vunpack.c.l.b16 %v1525
  %v1667 = vunpack.c.l.b16 %v1526
  %v1668 = vunpack.c.l.b16 %v1527
  %v1669 = vunpack.c.l.b16 %v1528
  %v1670 = vunpack.c.l.b16 %v1529
  %v1671 = vunpack.c.l.b16 %v1530
  %v1672 = vunpack.c.l.b16 %v1531
  %v1673 = vpack.c.b16 %v1658, %v1657
  %v1674 = vpack.c.b16 %v1660, %v1659
  %v1675 = vpack.c.b16 %v1662, %v1661
  %v1676 = vpack.c.b16 %v1664, %v1663
  %v1677 = vpack.c.b16 %v1666, %v1665
  %v1678 = vpack.c.b16 %v1668, %v1667
  %v1679 = vpack.c.b16 %v1670, %v1669
  %v1680 = vpack.c.b16 %v1672, %v1671
  %1689 = vmatprep.subr.bf16.mxu0 0
  %1690 = vmatpush1.bf16.msra.mxu0 %v1680
  %1691 = vmatprep.subr.bf16.mxu0 0
  %1692 = vmatpush1.bf16.msra.mxu0 %v1679
  %1693 = vmatprep.subr.bf16.mxu0 0
  %1694 = vmatpush1.bf16.msra.mxu0 %v1678
  %1695 = vmatprep.subr.bf16.mxu0 0
  %1696 = vmatpush1.bf16.msra.mxu0 %v1677
  %1697 = vmatprep.subr.bf16.mxu0 0
  %1698 = vmatpush1.bf16.msra.mxu0 %v1676
  %1699 = vmatprep.subr.bf16.mxu0 0
  %1700 = vmatpush1.bf16.msra.mxu0 %v1675
  %1701 = vmatprep.subr.bf16.mxu0 0
  %1702 = vmatpush1.bf16.msra.mxu0 %v1674
  %1703 = vmatprep.subr.bf16.mxu0 0
  %1704 = vmatpush1.bf16.msra.mxu0 %v1673
  %1705 = vmatprep.subr.bf16.mxu0 0
  %1706 = vmatpush2.bf16.msra.mxu0 0
  %1707 = vmatprep.subr.bf16.mxu0 0
  %1708 = vmatpush2.bf16.msra.mxu0 0
  %1709 = vmatprep.subr.bf16.mxu0 0
  %1710 = vmatpush2.bf16.msra.mxu0 0
  %1711 = vmatprep.subr.bf16.mxu0 0
  %1712 = vmatpush2.bf16.msra.mxu0 0
  %1713 = vmatprep.subr.bf16.mxu0 0
  %1714 = vmatpush2.bf16.msra.mxu0 0
  %1715 = vmatprep.subr.bf16.mxu0 0
  %1716 = vmatpush2.bf16.msra.mxu0 0
  %1717 = vmatprep.subr.bf16.mxu0 0
  %1718 = vmatpush2.bf16.msra.mxu0 0
  %1719 = vmatprep.subr.bf16.mxu0 0
  %1720 = vmatpush2.bf16.msra.mxu0 0
  %1721 = vmatprep.mubr.bf16.mxu0 0
  %1722 = vmatmul.mubr.bf16.gmra.mxu0 %v1515
  %v1723 = vpop.f32.mrf.mxu0
  %v1724 = vadd.f32 %v1636, %v1723
  %v1725 = vpop.f32.mrf.mxu0
  %v1726 = vpop.f32.mrf.mxu0
  %v1727 = vpop.f32.mrf.mxu0
  %1728 = vdwg.mxu0
  %v1729 = vmax.f32 %v1501, %v1502
  %v1730 = vadd.f32 %v1729, %v1511
  %v1731 = vmax.f32 %v1730, 0.0
  %v1732 = vpack.c.bf16 %v1731, %v1731
  %s1733 = scalar_lea.vmem %s6, 128
  %v1734 = vld [vmem:[%s1733] sm:$0xf]
  %v1735 = vld [vmem:[%s1733 + $0x4] sm:$0xf]
  %v1736 = vld [vmem:[%s1733 + $0x8] sm:$0xf]
  %v1737 = vld [vmem:[%s1733 + $0xc] sm:$0xf]
  %v1738 = vld [vmem:[%s1733 + $0x10] sm:$0xf]
  %v1739 = vld [vmem:[%s1733 + $0x14] sm:$0xf]
  %v1740 = vld [vmem:[%s1733 + $0x18] sm:$0xf]
  %v1741 = vld [vmem:[%s1733 + $0x1c] sm:$0xf]
  %v1742 = vld [vmem:[%s1733 + $0x20] sm:$0xf]
  %v1743 = vld [vmem:[%s1733 + $0x24] sm:$0xf]
  %v1744 = vld [vmem:[%s1733 + $0x28] sm:$0xf]
  %v1745 = vld [vmem:[%s1733 + $0x2c] sm:$0xf]
  %v1746 = vld [vmem:[%s1733 + $0x30] sm:$0xf]
  %v1747 = vld [vmem:[%s1733 + $0x34] sm:$0xf]
  %v1748 = vld [vmem:[%s1733 + $0x38] sm:$0xf]
  %v1749 = vld [vmem:[%s1733 + $0x3c] sm:$0xf]
  %v1766 = vunpack.c.l.b16 %v1734
  %v1767 = vunpack.c.l.b16 %v1735
  %v1768 = vunpack.c.l.b16 %v1736
  %v1769 = vunpack.c.l.b16 %v1737
  %v1770 = vunpack.c.l.b16 %v1738
  %v1771 = vunpack.c.l.b16 %v1739
  %v1772 = vunpack.c.l.b16 %v1740
  %v1773 = vunpack.c.l.b16 %v1741
  %v1774 = vunpack.c.l.b16 %v1742
  %v1775 = vunpack.c.l.b16 %v1743
  %v1776 = vunpack.c.l.b16 %v1744
  %v1777 = vunpack.c.l.b16 %v1745
  %v1778 = vunpack.c.l.b16 %v1746
  %v1779 = vunpack.c.l.b16 %v1747
  %v1780 = vunpack.c.l.b16 %v1748
  %v1781 = vunpack.c.l.b16 %v1749
  %v1782 = vpack.c.b16 %v1767, %v1766
  %v1783 = vpack.c.b16 %v1769, %v1768
  %v1784 = vpack.c.b16 %v1771, %v1770
  %v1785 = vpack.c.b16 %v1773, %v1772
  %v1786 = vpack.c.b16 %v1775, %v1774
  %v1787 = vpack.c.b16 %v1777, %v1776
  %v1788 = vpack.c.b16 %v1779, %v1778
  %v1789 = vpack.c.b16 %v1781, %v1780
  %1798 = vmatprep.subr.bf16.mxu0 0
  %1799 = vmatpush1.bf16.msra.mxu0 %v1789
  %1800 = vmatprep.subr.bf16.mxu0 0
  %1801 = vmatpush1.bf16.msra.mxu0 %v1788
  %1802 = vmatprep.subr.bf16.mxu0 0
  %1803 = vmatpush1.bf16.msra.mxu0 %v1787
  %1804 = vmatprep.subr.bf16.mxu0 0
  %1805 = vmatpush1.bf16.msra.mxu0 %v1786
  %1806 = vmatprep.subr.bf16.mxu0 0
  %1807 = vmatpush1.bf16.msra.mxu0 %v1785
  %1808 = vmatprep.subr.bf16.mxu0 0
  %1809 = vmatpush1.bf16.msra.mxu0 %v1784
  %1810 = vmatprep.subr.bf16.mxu0 0
  %1811 = vmatpush1.bf16.msra.mxu0 %v1783
  %1812 = vmatprep.subr.bf16.mxu0 0
  %1813 = vmatpush1.bf16.msra.mxu0 %v1782
  %1814 = vmatprep.subr.bf16.mxu0 0
  %1815 = vmatpush2.bf16.msra.mxu0 0
  %1816 = vmatprep.subr.bf16.mxu0 0
  %1817 = vmatpush2.bf16.msra.mxu0 0
  %1818 = vmatprep.subr.bf16.mxu0 0
  %1819 = vmatpush2.bf16.msra.mxu0 0
  %1820 = vmatprep.subr.bf16.mxu0 0
  %1821 = vmatpush2.bf16.msra.mxu0 0
  %1822 = vmatprep.subr.bf16.mxu0 0
  %1823 = vmatpush2.bf16.msra.mxu0 0
  %1824 = vmatprep.subr.bf16.mxu0 0
  %1825 = vmatpush2.bf16.msra.mxu0 0
  %1826 = vmatprep.subr.bf16.mxu0 0
  %1827 = vmatpush2.bf16.msra.mxu0 0
  %1828 = vmatprep.subr.bf16.mxu0 0
  %1829 = vmatpush2.bf16.msra.mxu0 0
  %1830 = vmatprep.mubr.bf16.mxu0 0
  %1831 = vmatmul.mubr.bf16.gmra.mxu0 %v1732
  %v1832 = vpop.f32.mrf.mxu0
  %v1833 = vadd.f32 0.0, %v1832
  %v1834 = vpop.f32.mrf.mxu0
  %v1835 = vpop.f32.mrf.mxu0
  %v1836 = vpop.f32.mrf.mxu0
  %1837 = vdwg.mxu0
  %v1838 = vadd.f32 %v1724, %v1833
  %v1839 = vmax.f32 %v1503, %v1504
  %v1840 = vadd.f32 %v1839, %v1511
  %v1841 = vmax.f32 %v1840, 0.0
  %v1842 = vpack.c.bf16 %v1841, %v1841
  %s1843 = scalar_lea.vmem %s6, 192
  %v1844 = vld [vmem:[%s1843] sm:$0xf]
  %v1845 = vld [vmem:[%s1843 + $0x4] sm:$0xf]
  %v1846 = vld [vmem:[%s1843 + $0x8] sm:$0xf]
  %v1847 = vld [vmem:[%s1843 + $0xc] sm:$0xf]
  %v1848 = vld [vmem:[%s1843 + $0x10] sm:$0xf]
  %v1849 = vld [vmem:[%s1843 + $0x14] sm:$0xf]
  %v1850 = vld [vmem:[%s1843 + $0x18] sm:$0xf]
  %v1851 = vld [vmem:[%s1843 + $0x1c] sm:$0xf]
  %v1852 = vld [vmem:[%s1843 + $0x20] sm:$0xf]
  %v1853 = vld [vmem:[%s1843 + $0x24] sm:$0xf]
  %v1854 = vld [vmem:[%s1843 + $0x28] sm:$0xf]
  %v1855 = vld [vmem:[%s1843 + $0x2c] sm:$0xf]
  %v1856 = vld [vmem:[%s1843 + $0x30] sm:$0xf]
  %v1857 = vld [vmem:[%s1843 + $0x34] sm:$0xf]
  %v1858 = vld [vmem:[%s1843 + $0x38] sm:$0xf]
  %v1859 = vld [vmem:[%s1843 + $0x3c] sm:$0xf]
  %v1876 = vunpack.c.l.b16 %v1844
  %v1877 = vunpack.c.l.b16 %v1845
  %v1878 = vunpack.c.l.b16 %v1846
  %v1879 = vunpack.c.l.b16 %v1847
  %v1880 = vunpack.c.l.b16 %v1848
  %v1881 = vunpack.c.l.b16 %v1849
  %v1882 = vunpack.c.l.b16 %v1850
  %v1883 = vunpack.c.l.b16 %v1851
  %v1884 = vunpack.c.l.b16 %v1852
  %v1885 = vunpack.c.l.b16 %v1853
  %v1886 = vunpack.c.l.b16 %v1854
  %v1887 = vunpack.c.l.b16 %v1855
  %v1888 = vunpack.c.l.b16 %v1856
  %v1889 = vunpack.c.l.b16 %v1857
  %v1890 = vunpack.c.l.b16 %v1858
  %v1891 = vunpack.c.l.b16 %v1859
  %v1892 = vpack.c.b16 %v1877, %v1876
  %v1893 = vpack.c.b16 %v1879, %v1878
  %v1894 = vpack.c.b16 %v1881, %v1880
  %v1895 = vpack.c.b16 %v1883, %v1882
  %v1896 = vpack.c.b16 %v1885, %v1884
  %v1897 = vpack.c.b16 %v1887, %v1886
  %v1898 = vpack.c.b16 %v1889, %v1888
  %v1899 = vpack.c.b16 %v1891, %v1890
  %1908 = vmatprep.subr.bf16.mxu0 0
  %1909 = vmatpush1.bf16.msra.mxu0 %v1899
  %1910 = vmatprep.subr.bf16.mxu0 0
  %1911 = vmatpush1.bf16.msra.mxu0 %v1898
  %1912 = vmatprep.subr.bf16.mxu0 0
  %1913 = vmatpush1.bf16.msra.mxu0 %v1897
  %1914 = vmatprep.subr.bf16.mxu0 0
  %1915 = vmatpush1.bf16.msra.mxu0 %v1896
  %1916 = vmatprep.subr.bf16.mxu0 0
  %1917 = vmatpush1.bf16.msra.mxu0 %v1895
  %1918 = vmatprep.subr.bf16.mxu0 0
  %1919 = vmatpush1.bf16.msra.mxu0 %v1894
  %1920 = vmatprep.subr.bf16.mxu0 0
  %1921 = vmatpush1.bf16.msra.mxu0 %v1893
  %1922 = vmatprep.subr.bf16.mxu0 0
  %1923 = vmatpush1.bf16.msra.mxu0 %v1892
  %1924 = vmatprep.subr.bf16.mxu0 0
  %1925 = vmatpush2.bf16.msra.mxu0 0
  %1926 = vmatprep.subr.bf16.mxu0 0
  %1927 = vmatpush2.bf16.msra.mxu0 0
  %1928 = vmatprep.subr.bf16.mxu0 0
  %1929 = vmatpush2.bf16.msra.mxu0 0
  %1930 = vmatprep.subr.bf16.mxu0 0
  %1931 = vmatpush2.bf16.msra.mxu0 0
  %1932 = vmatprep.subr.bf16.mxu0 0
  %1933 = vmatpush2.bf16.msra.mxu0 0
  %1934 = vmatprep.subr.bf16.mxu0 0
  %1935 = vmatpush2.bf16.msra.mxu0 0
  %1936 = vmatprep.subr.bf16.mxu0 0
  %1937 = vmatpush2.bf16.msra.mxu0 0
  %1938 = vmatprep.subr.bf16.mxu0 0
  %1939 = vmatpush2.bf16.msra.mxu0 0
  %1940 = vmatprep.mubr.bf16.mxu0 0
  %1941 = vmatmul.mubr.bf16.gmra.mxu0 %v1842
  %v1942 = vpop.f32.mrf.mxu0
  %v1943 = vadd.f32 0.0, %v1942
  %v1944 = vpop.f32.mrf.mxu0
  %v1945 = vpop.f32.mrf.mxu0
  %v1946 = vpop.f32.mrf.mxu0
  %1947 = vdwg.mxu0
  %v1948 = vadd.f32 %v1838, %v1943
  %v1949 = vld [vmem:[%s7] sm:$0x1]
  %v1951 = vlaneseq
  %v1952 = vshrl.u32 %v1951, 7
  %v1953 = vsub.s32 0, %v1952
  %v1954 = vrot.slane %v1949, %v1953
  %v1956 = vadd.f32 %v1948, %v1954
  %v1957 = vmax.f32 %v1956, 0.0
  %v1958 = vpack.c.bf16 %v1957, %v1957
  %v1959 = vld [vmem:[%s8] sm:$0xf]
  %v1960 = vld [vmem:[%s8 + $0x4] sm:$0xf]
  %v1961 = vld [vmem:[%s8 + $0x8] sm:$0xf]
  %v1962 = vld [vmem:[%s8 + $0xc] sm:$0xf]
  %v1963 = vld [vmem:[%s8 + $0x10] sm:$0xf]
  %v1964 = vld [vmem:[%s8 + $0x14] sm:$0xf]
  %v1965 = vld [vmem:[%s8 + $0x18] sm:$0x1]
  %v1966 = vld [vmem:[%s9] sm:$0x1]
  %v1968 = vlaneseq
  %v1969 = vshrl.u32 %v1968, 7
  %v1970 = vsub.s32 0, %v1969
  %v1971 = vrot.slane %v1966, %v1970
  %v1980 = vunpack.c.l.b16 %v1959
  %v1981 = vunpack.c.l.b16 %v1960
  %v1982 = vunpack.c.l.b16 %v1961
  %v1983 = vunpack.c.l.b16 %v1962
  %v1984 = vunpack.c.l.b16 %v1963
  %v1985 = vunpack.c.l.b16 %v1964
  %v1986 = vunpack.c.l.b16 %v1965
  %v1987 = vpack.c.b16 %v1981, %v1980
  %v1988 = vpack.c.b16 %v1983, %v1982
  %v1989 = vpack.c.b16 %v1985, %v1984
  %v1990 = vpack.c.b16 %v1986, %v1986
  %vm1994 = vcmask 408576
  %v1996 = vsel %vm1994, %v1958, 0
  %vm1998 = vcmask 1040384
  %v2000 = vsel %vm1998, %v1990, 0
  %2002 = vmatprep.subr.bf16.mxu0 0
  %2003 = vmatpush1.bf16.msra.mxu0 0
  %2004 = vmatprep.subr.bf16.mxu0 0
  %2005 = vmatpush1.bf16.msra.mxu0 0
  %2006 = vmatprep.subr.bf16.mxu0 0
  %2007 = vmatpush1.bf16.msra.mxu0 0
  %2008 = vmatprep.subr.bf16.mxu0 0
  %2009 = vmatpush1.bf16.msra.mxu0 0
  %2010 = vmatprep.subr.bf16.mxu0 0
  %2011 = vmatpush1.bf16.msra.mxu0 %v2000
  %2012 = vmatprep.subr.bf16.mxu0 0
  %2013 = vmatpush1.bf16.msra.mxu0 %v1989
  %2014 = vmatprep.subr.bf16.mxu0 0
  %2015 = vmatpush1.bf16.msra.mxu0 %v1988
  %2016 = vmatprep.subr.bf16.mxu0 0
  %2017 = vmatpush1.bf16.msra.mxu0 %v1987
  %2018 = vmatprep.subr.bf16.mxu0 0
  %2019 = vmatpush2.bf16.msra.mxu0 0
  %2020 = vmatprep.subr.bf16.mxu0 0
  %2021 = vmatpush2.bf16.msra.mxu0 0
  %2022 = vmatprep.subr.bf16.mxu0 0
  %2023 = vmatpush2.bf16.msra.mxu0 0
  %2024 = vmatprep.subr.bf16.mxu0 0
  %2025 = vmatpush2.bf16.msra.mxu0 0
  %2026 = vmatprep.subr.bf16.mxu0 0
  %2027 = vmatpush2.bf16.msra.mxu0 0
  %2028 = vmatprep.subr.bf16.mxu0 0
  %2029 = vmatpush2.bf16.msra.mxu0 0
  %2030 = vmatprep.subr.bf16.mxu0 0
  %2031 = vmatpush2.bf16.msra.mxu0 0
  %2032 = vmatprep.subr.bf16.mxu0 0
  %2033 = vmatpush2.bf16.msra.mxu0 0
  %2034 = vmatprep.mubr.bf16.mxu0 0
  %2035 = vmatmul.mubr.bf16.gmra.mxu0 %v1996
  %v2036 = vpop.f32.mrf.mxu0
  %v2037 = vadd.f32 %v1971, %v2036
  %v2038 = vpop.f32.mrf.mxu0
  %v2039 = vpop.f32.mrf.mxu0
  %v2040 = vpop.f32.mrf.mxu0
  %2041 = vdwg.mxu0
  %v2042 = vmax.f32 %v2037, 0.0
  %vm2043 = vcmask 80896
  %v2044 = vsel %vm2043, %v2042, -inf
  %2045 = vmax.xlane.f32.xlu0 %v2044
  %v2046 = vpop.xlane.xlu0 %2045
  %v2047 = vsub.f32 %v2042, %v2046
  %v2048 = vmul.f32 %v2047, 1.442695
  %v2049 = vpow.pop %v2048
  %v2050 = vsel %vm2043, %v2049, 0.0
  %2051 = vadd.xlane.f32.xlu0 %v2050
  %v2052 = vpop.xlane.xlu0 %2051
  %v2053 = vlog2.pop %v2052
  %v2054 = vmul.f32 %v2053, 0.6931472
  %v2055 = vsub.f32 %v2047, %v2054
  %2056 = vst.msk [vmem:[%s10] sm:$0xff] %vm2043, %v2055
  // Predicated region
  $region42: #{_net_forward_impl.1} parent=0 // pred_check
    _
  $region43: #{_net_forward_impl.1} parent=0 // pred_check_branch
    %2058 = sbr.rel (0) target = $region45
  $region44: #{_net_forward_impl.1} parent=0 // pred_region
    _
  $region45: #{_net_forward_impl.1} parent=0 // pred_fallthru
    _
  // Predicated region
  $region46: #{_net_forward_impl.1} parent=0 // pred_check
    _
  $region47: #{_net_forward_impl.1} parent=0 // pred_check_branch
    %2060 = sbr.rel (0) target = $region49
  $region48: #{_net_forward_impl.1} parent=0 // pred_region
    _
  $region49: #{_net_forward_impl.1} parent=0 // pred_fallthru
    _

</llo_original>
